<compile_context>
chip_gen: v6e
topology: v6e:2x2x1
jax: 0.10.0
libtpu: 0.0.40
codegen_flags: <defaults>
</compile_context>

<pallas_src>
import jax
import jax.numpy as jnp
from jax.experimental import pallas as pl
from jax.experimental.pallas import tpu as pltpu

EPS = 1e-5            # nn.BatchNorm2d default
LEAKY_SLOPE = 0.01    # self.relu = nn.LeakyReLU() default negative_slope


def _pick_hw_tile(hw):
    """Largest lane-dense tile (multiple of 128, <= 2048) that divides hw, else full hw."""
    if hw % 128 != 0:
        return hw
    for cand in (2048, 1024, 512, 256, 128):
        if hw % cand == 0:
            return cand
    return hw


def _lrelu(y):
    return jnp.where(y >= 0, y, LEAKY_SLOPE * y)


def _make_stats_kernel(inv_cnt):
    """inv_cnt = 1 / (N*H*W): BN reduces over batch + spatial dims (biased variance)."""

    def stats_kernel(x_ref, w0_ref, w1_ref, w2_ref, g_ref, be_ref,
                     sum_out_ref, sq_out_ref, sum_ref, sq_ref):
        ph = pl.program_id(0)     # stage whose statistics are being accumulated
        n = pl.program_id(1)      # batch element
        t = pl.program_id(2)      # HW tile

        @pl.when((ph == 0) & (n == 0) & (t == 0))
        def _init():
            sum_ref[...] = jnp.zeros_like(sum_ref)
            sq_ref[...] = jnp.zeros_like(sq_ref)

        x = x_ref[0].astype(jnp.bfloat16)                                     # (Cin, T)
        y0 = jnp.dot(w0_ref[...], x, preferred_element_type=jnp.float32)      # (planes, T)

        def accumulate(k, y):
            sum_ref[k] = sum_ref[k] + jnp.sum(y, axis=1, keepdims=True)
            sq_ref[k] = sq_ref[k] + jnp.sum(y * y, axis=1, keepdims=True)

        def bn_affine(k):
            # single-pass stats: var = E[y^2] - mu^2 (clamped), folded with gamma/beta.
            mu = sum_ref[k] * inv_cnt
            var = jnp.maximum(sq_ref[k] * inv_cnt - mu * mu, 0.0)
            scale = g_ref[k] * jax.lax.rsqrt(var + EPS)
            return scale, be_ref[k] - mu * scale

        @pl.when(ph == 0)
        def _phase0():                       # stats of y0 = conv0(x)
            accumulate(0, y0)

        @pl.when(ph == 1)
        def _phase1():                       # stats of y1 = conv1(lrelu(bn0(y0)))
            s0, h0 = bn_affine(0)
            r = _lrelu(y0 * s0 + h0)
            y1 = jnp.dot(w1_ref[...], r.astype(jnp.bfloat16),
                         preferred_element_type=jnp.float32)
            accumulate(1, y1)

        @pl.when(ph == 2)
        def _phase2():                       # stats of y2 = conv2(lrelu(bn1(y1)))
            s0, h0 = bn_affine(0)
            r = _lrelu(y0 * s0 + h0)
            y1 = jnp.dot(w1_ref[...], r.astype(jnp.bfloat16),
                         preferred_element_type=jnp.float32)
            s1, h1 = bn_affine(1)
            z = _lrelu(y1 * s1 + h1)
            y2 = jnp.dot(w2_ref[...], z.astype(jnp.bfloat16),
                         preferred_element_type=jnp.float32)
            accumulate(2, y2)

        @pl.when((ph == pl.num_programs(0) - 1)
                 & (n == pl.num_programs(1) - 1)
                 & (t == pl.num_programs(2) - 1))
        def _finalize():
            sum_out_ref[...] = sum_ref[...]
            sq_out_ref[...] = sq_ref[...]

    return stats_kernel


def _apply_kernel(x_ref, w0_ref, w1_ref, w2_ref, scale_ref, shift_ref, out_ref):
    x = x_ref[0].astype(jnp.bfloat16)                                          # (Cin, T)

    y0 = jnp.dot(w0_ref[...], x, preferred_element_type=jnp.float32)
    r = _lrelu(y0 * scale_ref[0] + shift_ref[0])                               # residual (f32)

    y1 = jnp.dot(w1_ref[...], r.astype(jnp.bfloat16),
                 preferred_element_type=jnp.float32)
    z = _lrelu(y1 * scale_ref[1] + shift_ref[1])

    y2 = jnp.dot(w2_ref[...], z.astype(jnp.bfloat16),
                 preferred_element_type=jnp.float32)
    out_ref[0] = (y2 * scale_ref[2] + shift_ref[2] + r).astype(out_ref.dtype)


def subspace_block(x_nchw, params):
    """x_nchw: (N, Cin, H, W) float32. Returns (N, planes, H, W) float32."""
    N, Cin, H, W = x_nchw.shape
    planes = params["w0"].shape[0]
    HW = H * W
    P = N * HW

    x = x_nchw.reshape(N, Cin, HW)      # pure reshape, no transpose / HBM round-trip
    T = _pick_hw_tile(HW)
    nt = HW // T

    w0 = params["w0"].astype(jnp.bfloat16)
    w1 = params["w1"].astype(jnp.bfloat16)
    w2 = params["w2"].astype(jnp.bfloat16)
    gammas = jnp.stack([params["g0"], params["g1"], params["g2"]])   # (3, planes, 1) f32
    betas = jnp.stack([params["be0"], params["be1"], params["be2"]])

    stat_shape = jax.ShapeDtypeStruct((3, planes, 1), jnp.float32)
    stat_spec3 = pl.BlockSpec((3, planes, 1), lambda p, n, t: (0, 0, 0))

    # --- pass 1: global BN statistics (sequential over phases/tiles, accumulated in VMEM) ---
    sums, sqs = pl.pallas_call(
        _make_stats_kernel(1.0 / float(P)),
        out_shape=(stat_shape, stat_shape),
        grid=(3, N, nt),
        in_specs=[
            pl.BlockSpec((1, Cin, T), lambda p, n, t: (n, 0, t)),
            pl.BlockSpec((planes, Cin), lambda p, n, t: (0, 0)),
            pl.BlockSpec((planes, planes), lambda p, n, t: (0, 0)),
            pl.BlockSpec((planes, planes), lambda p, n, t: (0, 0)),
            stat_spec3,
            stat_spec3,
        ],
        out_specs=(stat_spec3, stat_spec3),
        scratch_shapes=[pltpu.VMEM((3, planes, 1), jnp.float32),
                        pltpu.VMEM((3, planes, 1), jnp.float32)],
        compiler_params=pltpu.CompilerParams(
            dimension_semantics=("arbitrary", "arbitrary", "arbitrary")),
    )(x, w0, w1, w2, gammas, betas)

    # Fold BN (biased variance, eps=1e-5) into per-channel scale/shift (tiny: 3*planes values).
    mu = sums * (1.0 / P)
    var = jnp.maximum(sqs * (1.0 / P) - mu * mu, 0.0)
    scale = gammas * jax.lax.rsqrt(var + EPS)        # (3, planes, 1)
    shift = betas - mu * scale

    # --- pass 2: apply conv/BN/LeakyReLU chain + residual, fully parallel over (N, HW tiles) ---
    out = pl.pallas_call(
        _apply_kernel,
        out_shape=jax.ShapeDtypeStruct((N, planes, HW), jnp.float32),
        grid=(N, nt),
        in_specs=[
            pl.BlockSpec((1, Cin, T), lambda n, t: (n, 0, t)),
            pl.BlockSpec((planes, Cin), lambda n, t: (0, 0)),
            pl.BlockSpec((planes, planes), lambda n, t: (0, 0)),
            pl.BlockSpec((planes, planes), lambda n, t: (0, 0)),
            pl.BlockSpec((3, planes, 1), lambda n, t: (0, 0, 0)),
            pl.BlockSpec((3, planes, 1), lambda n, t: (0, 0, 0)),
        ],
        out_specs=pl.BlockSpec((1, planes, T), lambda n, t: (n, 0, t)),
        compiler_params=pltpu.CompilerParams(
            dimension_semantics=("parallel", "parallel")),
    )(x, w0, w1, w2, scale, shift)

    return out.reshape(N, planes, H, W)


def init_params(key, inplanes, planes):
    ks = jax.random.split(key, 12)

    def w(k, cout, cin):   # PyTorch Conv2d weight (out, in, 1, 1) squeezed to (out, in)
        return 0.1 * jax.random.normal(k, (cout, cin), jnp.float32)

    def vec(k, scale, offset):
        return offset + scale * jax.random.normal(k, (planes, 1), jnp.float32)

    # Conv biases exist in the PyTorch module but are exactly cancelled by training-mode
    # BatchNorm mean subtraction, so the kernels never read them (kept only for fidelity).
    return {
        "w0": w(ks[0], planes, inplanes), "b0": vec(ks[1], 0.1, 0.0),
        "g0": vec(ks[2], 0.05, 1.0),      "be0": vec(ks[3], 0.05, 0.0),
        "w1": w(ks[4], planes, planes),   "b1": vec(ks[5], 0.1, 0.0),
        "g1": vec(ks[6], 0.05, 1.0),      "be1": vec(ks[7], 0.05, 0.0),
        "w2": w(ks[8], planes, planes),   "b2": vec(ks[9], 0.1, 0.0),
        "g2": vec(ks[10], 0.05, 1.0),     "be2": vec(ks[11], 0.05, 0.0),
    }


if __name__ == "__main__":
    key = jax.random.PRNGKey(0)
    k_x, k_p = jax.random.split(key)

    N, Cin, H, W = 2, 4, 16, 16
    planes = 8

    x = jax.random.normal(k_x, (N, Cin, H, W), jnp.float32)
    params = init_params(k_p, Cin, planes)

    out = jax.jit(subspace_block)(x, params)
    jax.block_until_ready(out)
    assert out.shape == (N, planes, H, W), out.shape
    assert bool(jnp.all(jnp.isfinite(out)))
    print("KERNEL_OK")
</pallas_src>

<mosaic_0001>
module attributes {stable_mosaic.version = 11 : i64} {
  func.func @stats_kernel(%arg0: i32, %arg1: i32, %arg2: i32, %arg3: memref<1x4x256xf32, #tpu.memory_space<vmem>>, %arg4: memref<8x4xbf16, #tpu.memory_space<vmem>>, %arg5: memref<8x8xbf16, #tpu.memory_space<vmem>>, %arg6: memref<8x8xbf16, #tpu.memory_space<vmem>>, %arg7: memref<3x8x1xf32, #tpu.memory_space<vmem>>, %arg8: memref<3x8x1xf32, #tpu.memory_space<vmem>>, %arg9: memref<3x8x1xf32, #tpu.memory_space<vmem>>, %arg10: memref<3x8x1xf32, #tpu.memory_space<vmem>>, %arg11: memref<3x8x1xf32, #tpu.memory_space<vmem>>, %arg12: memref<3x8x1xf32, #tpu.memory_space<vmem>>) attributes {dimension_semantics = [#tpu.dimension_semantics<arbitrary>, #tpu.dimension_semantics<arbitrary>, #tpu.dimension_semantics<arbitrary>], iteration_bounds = array<i64: 3, 2, 1>, scalar_prefetch = 0 : i64, scratch_operands = 2 : i64, tpu.core_type = #tpu.core_type<tc>, window_params = [{transform_indices = @transform_0, window_bounds = array<i64: 1, 4, 256>}, {pipeline_mode = #tpu.pipeline_mode<synchronous>, transform_indices = @transform_1, window_bounds = array<i64: 8, 4>}, {pipeline_mode = #tpu.pipeline_mode<synchronous>, transform_indices = @transform_2, window_bounds = array<i64: 8, 8>}, {pipeline_mode = #tpu.pipeline_mode<synchronous>, transform_indices = @transform_3, window_bounds = array<i64: 8, 8>}, {pipeline_mode = #tpu.pipeline_mode<synchronous>, transform_indices = @transform_4, window_bounds = array<i64: 3, 8, 1>}, {pipeline_mode = #tpu.pipeline_mode<synchronous>, transform_indices = @transform_5, window_bounds = array<i64: 3, 8, 1>}, {pipeline_mode = #tpu.pipeline_mode<synchronous>, transform_indices = @transform_6, window_bounds = array<i64: 3, 8, 1>}, {pipeline_mode = #tpu.pipeline_mode<synchronous>, transform_indices = @transform_7, window_bounds = array<i64: 3, 8, 1>}]} {
    %c0_i32 = arith.constant 0 : i32
    %0 = arith.cmpi eq, %arg0, %c0_i32 : i32
    %c0_i32_0 = arith.constant 0 : i32
    %1 = arith.cmpi eq, %arg1, %c0_i32_0 : i32
    %2 = arith.andi %0, %1 : i1
    %c0_i32_1 = arith.constant 0 : i32
    %3 = arith.cmpi eq, %arg2, %c0_i32_1 : i32
    %4 = arith.andi %2, %3 : i1
    %5 = arith.extui %4 : i1 to i32
    %c0_i32_2 = arith.constant 0 : i32
    %6 = arith.cmpi ne, %5, %c0_i32_2 : i32
    scf.if %6 {
      %cst_15 = arith.constant 0.000000e+00 : f32
      %28 = vector.broadcast %cst_15 : f32 to vector<3x8x1xf32>
      %c0_16 = arith.constant 0 : index
      %c0_17 = arith.constant 0 : index
      %c0_18 = arith.constant 0 : index
      %29 = vector.load %arg11[%c0_16, %c0_17, %c0_18] : memref<3x8x1xf32, #tpu.memory_space<vmem>>, vector<3x8x1xf32>
      tpu.vector_store %arg11[%c0_16, %c0_17, %c0_18], %28 {strides = array<i32>} : memref<3x8x1xf32, #tpu.memory_space<vmem>>, vector<3x8x1xf32>,
      %cst_19 = arith.constant 0.000000e+00 : f32
      %30 = vector.broadcast %cst_19 : f32 to vector<3x8x1xf32>
      %c0_20 = arith.constant 0 : index
      %c0_21 = arith.constant 0 : index
      %c0_22 = arith.constant 0 : index
      %31 = vector.load %arg12[%c0_20, %c0_21, %c0_22] : memref<3x8x1xf32, #tpu.memory_space<vmem>>, vector<3x8x1xf32>
      tpu.vector_store %arg12[%c0_20, %c0_21, %c0_22], %30 {strides = array<i32>} : memref<3x8x1xf32, #tpu.memory_space<vmem>>, vector<3x8x1xf32>,
    } else {
    }
    %c0 = arith.constant 0 : index
    %c0_3 = arith.constant 0 : index
    %c0_4 = arith.constant 0 : index
    %7 = vector.load %arg3[%c0, %c0_3, %c0_4] : memref<1x4x256xf32, #tpu.memory_space<vmem>>, vector<1x4x256xf32>
    %8 = vector.shape_cast %7 : vector<1x4x256xf32> to vector<4x256xf32>
    %9 = arith.truncf %8 : vector<4x256xf32> to vector<4x256xbf16>
    %c0_5 = arith.constant 0 : index
    %c0_6 = arith.constant 0 : index
    %10 = vector.load %arg4[%c0_5, %c0_6] : memref<8x4xbf16, #tpu.memory_space<vmem>>, vector<8x4xbf16>
    %cst = arith.constant dense<0.000000e+00> : vector<8x256xf32>
    %11 = tpu.matmul %10, %9, %cst {dimension_numbers = #tpu.dot_dimension_numbers<[1], [0], [0], [1], [0, 0, 1, 1], [], []>} : vector<8x4xbf16>, vector<4x256xbf16>, vector<8x256xf32> -> vector<8x256xf32>
    %c0_i32_7 = arith.constant 0 : i32
    %12 = arith.cmpi eq, %arg0, %c0_i32_7 : i32
    %13 = arith.extui %12 : i1 to i32
    %c0_i32_8 = arith.constant 0 : i32
    %14 = arith.cmpi ne, %13, %c0_i32_8 : i32
    scf.if %14 {
      %c0_15 = arith.constant 0 : index
      %c0_16 = arith.constant 0 : index
      %c0_17 = arith.constant 0 : index
      %28 = vector.load %arg11[%c0_15, %c0_16, %c0_17] : memref<3x8x1xf32, #tpu.memory_space<vmem>>, vector<1x8x1xf32>
      %29 = vector.shape_cast %28 : vector<1x8x1xf32> to vector<8x1xf32>
      %cst_18 = arith.constant dense<0.000000e+00> : vector<8xf32>
      %30 = vector.multi_reduction <add>, %11, %cst_18 [1] : vector<8x256xf32> to vector<8xf32>
      %31 = vector.shape_cast %30 : vector<8xf32> to vector<8x1xf32>
      %32 = arith.addf %29, %31 : vector<8x1xf32>
      %c0_19 = arith.constant 0 : index
      %c0_20 = arith.constant 0 : index
      %c0_21 = arith.constant 0 : index
      %33 = vector.load %arg11[%c0_19, %c0_20, %c0_21] : memref<3x8x1xf32, #tpu.memory_space<vmem>>, vector<1x8x1xf32>
      %34 = vector.shape_cast %33 : vector<1x8x1xf32> to vector<8x1xf32>
      %35 = vector.shape_cast %32 : vector<8x1xf32> to vector<1x8x1xf32>
      tpu.vector_store %arg11[%c0_19, %c0_20, %c0_21], %35 {strides = array<i32>} : memref<3x8x1xf32, #tpu.memory_space<vmem>>, vector<1x8x1xf32>,
      %c0_22 = arith.constant 0 : index
      %c0_23 = arith.constant 0 : index
      %c0_24 = arith.constant 0 : index
      %36 = vector.load %arg12[%c0_22, %c0_23, %c0_24] : memref<3x8x1xf32, #tpu.memory_space<vmem>>, vector<1x8x1xf32>
      %37 = vector.shape_cast %36 : vector<1x8x1xf32> to vector<8x1xf32>
      %38 = arith.mulf %11, %11 : vector<8x256xf32>
      %cst_25 = arith.constant dense<0.000000e+00> : vector<8xf32>
      %39 = vector.multi_reduction <add>, %38, %cst_25 [1] : vector<8x256xf32> to vector<8xf32>
      %40 = vector.shape_cast %39 : vector<8xf32> to vector<8x1xf32>
      %41 = arith.addf %37, %40 : vector<8x1xf32>
      %c0_26 = arith.constant 0 : index
      %c0_27 = arith.constant 0 : index
      %c0_28 = arith.constant 0 : index
      %42 = vector.load %arg12[%c0_26, %c0_27, %c0_28] : memref<3x8x1xf32, #tpu.memory_space<vmem>>, vector<1x8x1xf32>
      %43 = vector.shape_cast %42 : vector<1x8x1xf32> to vector<8x1xf32>
      %44 = vector.shape_cast %41 : vector<8x1xf32> to vector<1x8x1xf32>
      tpu.vector_store %arg12[%c0_26, %c0_27, %c0_28], %44 {strides = array<i32>} : memref<3x8x1xf32, #tpu.memory_space<vmem>>, vector<1x8x1xf32>,
    } else {
    }
    %c1_i32 = arith.constant 1 : i32
    %15 = arith.cmpi eq, %arg0, %c1_i32 : i32
    %16 = arith.extui %15 : i1 to i32
    %c0_i32_9 = arith.constant 0 : i32
    %17 = arith.cmpi ne, %16, %c0_i32_9 : i32
    scf.if %17 {
      %c0_15 = arith.constant 0 : index
      %c0_16 = arith.constant 0 : index
      %c0_17 = arith.constant 0 : index
      %28 = vector.load %arg11[%c0_15, %c0_16, %c0_17] : memref<3x8x1xf32, #tpu.memory_space<vmem>>, vector<1x8x1xf32>
      %29 = vector.shape_cast %28 : vector<1x8x1xf32> to vector<8x1xf32>
      %cst_18 = arith.constant 0.001953125 : f32
      %30 = vector.broadcast %cst_18 : f32 to vector<8x1xf32>
      %31 = arith.mulf %29, %30 : vector<8x1xf32>
      %c0_19 = arith.constant 0 : index
      %c0_20 = arith.constant 0 : index
      %c0_21 = arith.constant 0 : index
      %32 = vector.load %arg12[%c0_19, %c0_20, %c0_21] : memref<3x8x1xf32, #tpu.memory_space<vmem>>, vector<1x8x1xf32>
      %33 = vector.shape_cast %32 : vector<1x8x1xf32> to vector<8x1xf32>
      %cst_22 = arith.constant 0.001953125 : f32
      %34 = vector.broadcast %cst_22 : f32 to vector<8x1xf32>
      %35 = arith.mulf %33, %34 : vector<8x1xf32>
      %36 = arith.mulf %31, %31 : vector<8x1xf32>
      %37 = arith.subf %35, %36 : vector<8x1xf32>
      %cst_23 = arith.constant 0.000000e+00 : f32
      %38 = vector.broadcast %cst_23 : f32 to vector<8x1xf32>
      %39 = arith.maximumf %37, %38 : vector<8x1xf32>
      %c0_24 = arith.constant 0 : index
      %c0_25 = arith.constant 0 : index
      %c0_26 = arith.constant 0 : index
      %40 = vector.load %arg7[%c0_24, %c0_25, %c0_26] : memref<3x8x1xf32, #tpu.memory_space<vmem>>, vector<1x8x1xf32>
      %41 = vector.shape_cast %40 : vector<1x8x1xf32> to vector<8x1xf32>
      %cst_27 = arith.constant 9.99999974E-6 : f32
      %42 = vector.broadcast %cst_27 : f32 to vector<8x1xf32>
      %43 = arith.addf %39, %42 : vector<8x1xf32>
      %44 = math.rsqrt %43 : vector<8x1xf32>
      %45 = arith.mulf %41, %44 : vector<8x1xf32>
      %c0_28 = arith.constant 0 : index
      %c0_29 = arith.constant 0 : index
      %c0_30 = arith.constant 0 : index
      %46 = vector.load %arg8[%c0_28, %c0_29, %c0_30] : memref<3x8x1xf32, #tpu.memory_space<vmem>>, vector<1x8x1xf32>
      %47 = vector.shape_cast %46 : vector<1x8x1xf32> to vector<8x1xf32>
      %48 = arith.mulf %31, %45 : vector<8x1xf32>
      %49 = arith.subf %47, %48 : vector<8x1xf32>
      %50 = vector.broadcast %45 : vector<8x1xf32> to vector<8x256xf32>
      %51 = arith.mulf %11, %50 : vector<8x256xf32>
      %52 = vector.broadcast %49 : vector<8x1xf32> to vector<8x256xf32>
      %53 = arith.addf %51, %52 : vector<8x256xf32>
      %cst_31 = arith.constant 0.000000e+00 : f32
      %54 = vector.broadcast %cst_31 : f32 to vector<8x256xf32>
      %55 = arith.cmpf oge, %53, %54 : vector<8x256xf32>
      %cst_32 = arith.constant 0.00999999977 : f32
      %56 = vector.broadcast %cst_32 : f32 to vector<8x256xf32>
      %57 = arith.mulf %56, %53 : vector<8x256xf32>
      %58 = arith.select %55, %53, %57 : vector<8x256xi1>, vector<8x256xf32>
      %c0_33 = arith.constant 0 : index
      %c0_34 = arith.constant 0 : index
      %59 = vector.load %arg5[%c0_33, %c0_34] : memref<8x8xbf16, #tpu.memory_space<vmem>>, vector<8x8xbf16>
      %60 = arith.truncf %58 : vector<8x256xf32> to vector<8x256xbf16>
      %cst_35 = arith.constant dense<0.000000e+00> : vector<8x256xf32>
      %61 = tpu.matmul %59, %60, %cst_35 {dimension_numbers = #tpu.dot_dimension_numbers<[1], [0], [0], [1], [0, 0, 1, 1], [], []>} : vector<8x8xbf16>, vector<8x256xbf16>, vector<8x256xf32> -> vector<8x256xf32>
      %c1 = arith.constant 1 : index
      %c0_36 = arith.constant 0 : index
      %c0_37 = arith.constant 0 : index
      %62 = vector.load %arg11[%c1, %c0_36, %c0_37] : memref<3x8x1xf32, #tpu.memory_space<vmem>>, vector<1x8x1xf32>
      %63 = vector.shape_cast %62 : vector<1x8x1xf32> to vector<8x1xf32>
      %cst_38 = arith.constant dense<0.000000e+00> : vector<8xf32>
      %64 = vector.multi_reduction <add>, %61, %cst_38 [1] : vector<8x256xf32> to vector<8xf32>
      %65 = vector.shape_cast %64 : vector<8xf32> to vector<8x1xf32>
      %66 = arith.addf %63, %65 : vector<8x1xf32>
      %c1_39 = arith.constant 1 : index
      %c0_40 = arith.constant 0 : index
      %c0_41 = arith.constant 0 : index
      %67 = vector.load %arg11[%c1_39, %c0_40, %c0_41] : memref<3x8x1xf32, #tpu.memory_space<vmem>>, vector<1x8x1xf32>
      %68 = vector.shape_cast %67 : vector<1x8x1xf32> to vector<8x1xf32>
      %69 = vector.shape_cast %66 : vector<8x1xf32> to vector<1x8x1xf32>
      tpu.vector_store %arg11[%c1_39, %c0_40, %c0_41], %69 {strides = array<i32>} : memref<3x8x1xf32, #tpu.memory_space<vmem>>, vector<1x8x1xf32>,
      %c1_42 = arith.constant 1 : index
      %c0_43 = arith.constant 0 : index
      %c0_44 = arith.constant 0 : index
      %70 = vector.load %arg12[%c1_42, %c0_43, %c0_44] : memref<3x8x1xf32, #tpu.memory_space<vmem>>, vector<1x8x1xf32>
      %71 = vector.shape_cast %70 : vector<1x8x1xf32> to vector<8x1xf32>
      %72 = arith.mulf %61, %61 : vector<8x256xf32>
      %cst_45 = arith.constant dense<0.000000e+00> : vector<8xf32>
      %73 = vector.multi_reduction <add>, %72, %cst_45 [1] : vector<8x256xf32> to vector<8xf32>
      %74 = vector.shape_cast %73 : vector<8xf32> to vector<8x1xf32>
      %75 = arith.addf %71, %74 : vector<8x1xf32>
      %c1_46 = arith.constant 1 : index
      %c0_47 = arith.constant 0 : index
      %c0_48 = arith.constant 0 : index
      %76 = vector.load %arg12[%c1_46, %c0_47, %c0_48] : memref<3x8x1xf32, #tpu.memory_space<vmem>>, vector<1x8x1xf32>
      %77 = vector.shape_cast %76 : vector<1x8x1xf32> to vector<8x1xf32>
      %78 = vector.shape_cast %75 : vector<8x1xf32> to vector<1x8x1xf32>
      tpu.vector_store %arg12[%c1_46, %c0_47, %c0_48], %78 {strides = array<i32>} : memref<3x8x1xf32, #tpu.memory_space<vmem>>, vector<1x8x1xf32>,
    } else {
    }
    %c2_i32 = arith.constant 2 : i32
    %18 = arith.cmpi eq, %arg0, %c2_i32 : i32
    %19 = arith.extui %18 : i1 to i32
    %c0_i32_10 = arith.constant 0 : i32
    %20 = arith.cmpi ne, %19, %c0_i32_10 : i32
    scf.if %20 {
      %c0_15 = arith.constant 0 : index
      %c0_16 = arith.constant 0 : index
      %c0_17 = arith.constant 0 : index
      %28 = vector.load %arg11[%c0_15, %c0_16, %c0_17] : memref<3x8x1xf32, #tpu.memory_space<vmem>>, vector<1x8x1xf32>
      %29 = vector.shape_cast %28 : vector<1x8x1xf32> to vector<8x1xf32>
      %cst_18 = arith.constant 0.001953125 : f32
      %30 = vector.broadcast %cst_18 : f32 to vector<8x1xf32>
      %31 = arith.mulf %29, %30 : vector<8x1xf32>
      %c0_19 = arith.constant 0 : index
      %c0_20 = arith.constant 0 : index
      %c0_21 = arith.constant 0 : index
      %32 = vector.load %arg12[%c0_19, %c0_20, %c0_21] : memref<3x8x1xf32, #tpu.memory_space<vmem>>, vector<1x8x1xf32>
      %33 = vector.shape_cast %32 : vector<1x8x1xf32> to vector<8x1xf32>
      %cst_22 = arith.constant 0.001953125 : f32
      %34 = vector.broadcast %cst_22 : f32 to vector<8x1xf32>
      %35 = arith.mulf %33, %34 : vector<8x1xf32>
      %36 = arith.mulf %31, %31 : vector<8x1xf32>
      %37 = arith.subf %35, %36 : vector<8x1xf32>
      %cst_23 = arith.constant 0.000000e+00 : f32
      %38 = vector.broadcast %cst_23 : f32 to vector<8x1xf32>
      %39 = arith.maximumf %37, %38 : vector<8x1xf32>
      %c0_24 = arith.constant 0 : index
      %c0_25 = arith.constant 0 : index
      %c0_26 = arith.constant 0 : index
      %40 = vector.load %arg7[%c0_24, %c0_25, %c0_26] : memref<3x8x1xf32, #tpu.memory_space<vmem>>, vector<1x8x1xf32>
      %41 = vector.shape_cast %40 : vector<1x8x1xf32> to vector<8x1xf32>
      %cst_27 = arith.constant 9.99999974E-6 : f32
      %42 = vector.broadcast %cst_27 : f32 to vector<8x1xf32>
      %43 = arith.addf %39, %42 : vector<8x1xf32>
      %44 = math.rsqrt %43 : vector<8x1xf32>
      %45 = arith.mulf %41, %44 : vector<8x1xf32>
      %c0_28 = arith.constant 0 : index
      %c0_29 = arith.constant 0 : index
      %c0_30 = arith.constant 0 : index
      %46 = vector.load %arg8[%c0_28, %c0_29, %c0_30] : memref<3x8x1xf32, #tpu.memory_space<vmem>>, vector<1x8x1xf32>
      %47 = vector.shape_cast %46 : vector<1x8x1xf32> to vector<8x1xf32>
      %48 = arith.mulf %31, %45 : vector<8x1xf32>
      %49 = arith.subf %47, %48 : vector<8x1xf32>
      %50 = vector.broadcast %45 : vector<8x1xf32> to vector<8x256xf32>
      %51 = arith.mulf %11, %50 : vector<8x256xf32>
      %52 = vector.broadcast %49 : vector<8x1xf32> to vector<8x256xf32>
      %53 = arith.addf %51, %52 : vector<8x256xf32>
      %cst_31 = arith.constant 0.000000e+00 : f32
      %54 = vector.broadcast %cst_31 : f32 to vector<8x256xf32>
      %55 = arith.cmpf oge, %53, %54 : vector<8x256xf32>
      %cst_32 = arith.constant 0.00999999977 : f32
      %56 = vector.broadcast %cst_32 : f32 to vector<8x256xf32>
      %57 = arith.mulf %56, %53 : vector<8x256xf32>
      %58 = arith.select %55, %53, %57 : vector<8x256xi1>, vector<8x256xf32>
      %c0_33 = arith.constant 0 : index
      %c0_34 = arith.constant 0 : index
      %59 = vector.load %arg5[%c0_33, %c0_34] : memref<8x8xbf16, #tpu.memory_space<vmem>>, vector<8x8xbf16>
      %60 = arith.truncf %58 : vector<8x256xf32> to vector<8x256xbf16>
      %cst_35 = arith.constant dense<0.000000e+00> : vector<8x256xf32>
      %61 = tpu.matmul %59, %60, %cst_35 {dimension_numbers = #tpu.dot_dimension_numbers<[1], [0], [0], [1], [0, 0, 1, 1], [], []>} : vector<8x8xbf16>, vector<8x256xbf16>, vector<8x256xf32> -> vector<8x256xf32>
      %c1 = arith.constant 1 : index
      %c0_36 = arith.constant 0 : index
      %c0_37 = arith.constant 0 : index
      %62 = vector.load %arg11[%c1, %c0_36, %c0_37] : memref<3x8x1xf32, #tpu.memory_space<vmem>>, vector<1x8x1xf32>
      %63 = vector.shape_cast %62 : vector<1x8x1xf32> to vector<8x1xf32>
      %cst_38 = arith.constant 0.001953125 : f32
      %64 = vector.broadcast %cst_38 : f32 to vector<8x1xf32>
      %65 = arith.mulf %63, %64 : vector<8x1xf32>
      %c1_39 = arith.constant 1 : index
      %c0_40 = arith.constant 0 : index
      %c0_41 = arith.constant 0 : index
      %66 = vector.load %arg12[%c1_39, %c0_40, %c0_41] : memref<3x8x1xf32, #tpu.memory_space<vmem>>, vector<1x8x1xf32>
      %67 = vector.shape_cast %66 : vector<1x8x1xf32> to vector<8x1xf32>
      %cst_42 = arith.constant 0.001953125 : f32
      %68 = vector.broadcast %cst_42 : f32 to vector<8x1xf32>
      %69 = arith.mulf %67, %68 : vector<8x1xf32>
      %70 = arith.mulf %65, %65 : vector<8x1xf32>
      %71 = arith.subf %69, %70 : vector<8x1xf32>
      %cst_43 = arith.constant 0.000000e+00 : f32
      %72 = vector.broadcast %cst_43 : f32 to vector<8x1xf32>
      %73 = arith.maximumf %71, %72 : vector<8x1xf32>
      %c1_44 = arith.constant 1 : index
      %c0_45 = arith.constant 0 : index
      %c0_46 = arith.constant 0 : index
      %74 = vector.load %arg7[%c1_44, %c0_45, %c0_46] : memref<3x8x1xf32, #tpu.memory_space<vmem>>, vector<1x8x1xf32>
      %75 = vector.shape_cast %74 : vector<1x8x1xf32> to vector<8x1xf32>
      %cst_47 = arith.constant 9.99999974E-6 : f32
      %76 = vector.broadcast %cst_47 : f32 to vector<8x1xf32>
      %77 = arith.addf %73, %76 : vector<8x1xf32>
      %78 = math.rsqrt %77 : vector<8x1xf32>
      %79 = arith.mulf %75, %78 : vector<8x1xf32>
      %c1_48 = arith.constant 1 : index
      %c0_49 = arith.constant 0 : index
      %c0_50 = arith.constant 0 : index
      %80 = vector.load %arg8[%c1_48, %c0_49, %c0_50] : memref<3x8x1xf32, #tpu.memory_space<vmem>>, vector<1x8x1xf32>
      %81 = vector.shape_cast %80 : vector<1x8x1xf32> to vector<8x1xf32>
      %82 = arith.mulf %65, %79 : vector<8x1xf32>
      %83 = arith.subf %81, %82 : vector<8x1xf32>
      %84 = vector.broadcast %79 : vector<8x1xf32> to vector<8x256xf32>
      %85 = arith.mulf %61, %84 : vector<8x256xf32>
      %86 = vector.broadcast %83 : vector<8x1xf32> to vector<8x256xf32>
      %87 = arith.addf %85, %86 : vector<8x256xf32>
      %cst_51 = arith.constant 0.000000e+00 : f32
      %88 = vector.broadcast %cst_51 : f32 to vector<8x256xf32>
      %89 = arith.cmpf oge, %87, %88 : vector<8x256xf32>
      %cst_52 = arith.constant 0.00999999977 : f32
      %90 = vector.broadcast %cst_52 : f32 to vector<8x256xf32>
      %91 = arith.mulf %90, %87 : vector<8x256xf32>
      %92 = arith.select %89, %87, %91 : vector<8x256xi1>, vector<8x256xf32>
      %c0_53 = arith.constant 0 : index
      %c0_54 = arith.constant 0 : index
      %93 = vector.load %arg6[%c0_53, %c0_54] : memref<8x8xbf16, #tpu.memory_space<vmem>>, vector<8x8xbf16>
      %94 = arith.truncf %92 : vector<8x256xf32> to vector<8x256xbf16>
      %cst_55 = arith.constant dense<0.000000e+00> : vector<8x256xf32>
      %95 = tpu.matmul %93, %94, %cst_55 {dimension_numbers = #tpu.dot_dimension_numbers<[1], [0], [0], [1], [0, 0, 1, 1], [], []>} : vector<8x8xbf16>, vector<8x256xbf16>, vector<8x256xf32> -> vector<8x256xf32>
      %c2 = arith.constant 2 : index
      %c0_56 = arith.constant 0 : index
      %c0_57 = arith.constant 0 : index
      %96 = vector.load %arg11[%c2, %c0_56, %c0_57] : memref<3x8x1xf32, #tpu.memory_space<vmem>>, vector<1x8x1xf32>
      %97 = vector.shape_cast %96 : vector<1x8x1xf32> to vector<8x1xf32>
      %cst_58 = arith.constant dense<0.000000e+00> : vector<8xf32>
      %98 = vector.multi_reduction <add>, %95, %cst_58 [1] : vector<8x256xf32> to vector<8xf32>
      %99 = vector.shape_cast %98 : vector<8xf32> to vector<8x1xf32>
      %100 = arith.addf %97, %99 : vector<8x1xf32>
      %c2_59 = arith.constant 2 : index
      %c0_60 = arith.constant 0 : index
      %c0_61 = arith.constant 0 : index
      %101 = vector.load %arg11[%c2_59, %c0_60, %c0_61] : memref<3x8x1xf32, #tpu.memory_space<vmem>>, vector<1x8x1xf32>
      %102 = vector.shape_cast %101 : vector<1x8x1xf32> to vector<8x1xf32>
      %103 = vector.shape_cast %100 : vector<8x1xf32> to vector<1x8x1xf32>
      tpu.vector_store %arg11[%c2_59, %c0_60, %c0_61], %103 {strides = array<i32>} : memref<3x8x1xf32, #tpu.memory_space<vmem>>, vector<1x8x1xf32>,
      %c2_62 = arith.constant 2 : index
      %c0_63 = arith.constant 0 : index
      %c0_64 = arith.constant 0 : index
      %104 = vector.load %arg12[%c2_62, %c0_63, %c0_64] : memref<3x8x1xf32, #tpu.memory_space<vmem>>, vector<1x8x1xf32>
      %105 = vector.shape_cast %104 : vector<1x8x1xf32> to vector<8x1xf32>
      %106 = arith.mulf %95, %95 : vector<8x256xf32>
      %cst_65 = arith.constant dense<0.000000e+00> : vector<8xf32>
      %107 = vector.multi_reduction <add>, %106, %cst_65 [1] : vector<8x256xf32> to vector<8xf32>
      %108 = vector.shape_cast %107 : vector<8xf32> to vector<8x1xf32>
      %109 = arith.addf %105, %108 : vector<8x1xf32>
      %c2_66 = arith.constant 2 : index
      %c0_67 = arith.constant 0 : index
      %c0_68 = arith.constant 0 : index
      %110 = vector.load %arg12[%c2_66, %c0_67, %c0_68] : memref<3x8x1xf32, #tpu.memory_space<vmem>>, vector<1x8x1xf32>
      %111 = vector.shape_cast %110 : vector<1x8x1xf32> to vector<8x1xf32>
      %112 = vector.shape_cast %109 : vector<8x1xf32> to vector<1x8x1xf32>
      tpu.vector_store %arg12[%c2_66, %c0_67, %c0_68], %112 {strides = array<i32>} : memref<3x8x1xf32, #tpu.memory_space<vmem>>, vector<1x8x1xf32>,
    } else {
    }
    %c2_i32_11 = arith.constant 2 : i32
    %21 = arith.cmpi eq, %arg0, %c2_i32_11 : i32
    %c1_i32_12 = arith.constant 1 : i32
    %22 = arith.cmpi eq, %arg1, %c1_i32_12 : i32
    %23 = arith.andi %21, %22 : i1
    %c0_i32_13 = arith.constant 0 : i32
    %24 = arith.cmpi eq, %arg2, %c0_i32_13 : i32
    %25 = arith.andi %23, %24 : i1
    %26 = arith.extui %25 : i1 to i32
    %c0_i32_14 = arith.constant 0 : i32
    %27 = arith.cmpi ne, %26, %c0_i32_14 : i32
    scf.if %27 {
      %c0_15 = arith.constant 0 : index
      %c0_16 = arith.constant 0 : index
      %c0_17 = arith.constant 0 : index
      %28 = vector.load %arg11[%c0_15, %c0_16, %c0_17] : memref<3x8x1xf32, #tpu.memory_space<vmem>>, vector<3x8x1xf32>
      %c0_18 = arith.constant 0 : index
      %c0_19 = arith.constant 0 : index
      %c0_20 = arith.constant 0 : index
      %29 = vector.load %arg9[%c0_18, %c0_19, %c0_20] : memref<3x8x1xf32, #tpu.memory_space<vmem>>, vector<3x8x1xf32>
      tpu.vector_store %arg9[%c0_18, %c0_19, %c0_20], %28 {strides = array<i32>} : memref<3x8x1xf32, #tpu.memory_space<vmem>>, vector<3x8x1xf32>,
      %c0_21 = arith.constant 0 : index
      %c0_22 = arith.constant 0 : index
      %c0_23 = arith.constant 0 : index
      %30 = vector.load %arg12[%c0_21, %c0_22, %c0_23] : memref<3x8x1xf32, #tpu.memory_space<vmem>>, vector<3x8x1xf32>
      %c0_24 = arith.constant 0 : index
      %c0_25 = arith.constant 0 : index
      %c0_26 = arith.constant 0 : index
      %31 = vector.load %arg10[%c0_24, %c0_25, %c0_26] : memref<3x8x1xf32, #tpu.memory_space<vmem>>, vector<3x8x1xf32>
      tpu.vector_store %arg10[%c0_24, %c0_25, %c0_26], %30 {strides = array<i32>} : memref<3x8x1xf32, #tpu.memory_space<vmem>>, vector<3x8x1xf32>,
    } else {
    }
    return
  }
  func.func @transform_0(%arg0: i32, %arg1: i32, %arg2: i32) -> (i32, i32, i32) {
    %c0_i32 = arith.constant 0 : i32
    %c0_i32_0 = arith.constant 0 : i32
    return %arg1, %c0_i32, %arg2 : i32, i32, i32
  }
  func.func @transform_1(%arg0: i32, %arg1: i32, %arg2: i32) -> (i32, i32) {
    %c0_i32 = arith.constant 0 : i32
    %c0_i32_0 = arith.constant 0 : i32
    %c0_i32_1 = arith.constant 0 : i32
    return %c0_i32, %c0_i32_0 : i32, i32
  }
  func.func @transform_2(%arg0: i32, %arg1: i32, %arg2: i32) -> (i32, i32) {
    %c0_i32 = arith.constant 0 : i32
    %c0_i32_0 = arith.constant 0 : i32
    %c0_i32_1 = arith.constant 0 : i32
    return %c0_i32, %c0_i32_0 : i32, i32
  }
  func.func @transform_3(%arg0: i32, %arg1: i32, %arg2: i32) -> (i32, i32) {
    %c0_i32 = arith.constant 0 : i32
    %c0_i32_0 = arith.constant 0 : i32
    %c0_i32_1 = arith.constant 0 : i32
    return %c0_i32, %c0_i32_0 : i32, i32
  }
  func.func @transform_4(%arg0: i32, %arg1: i32, %arg2: i32) -> (i32, i32, i32) {
    %c0_i32 = arith.constant 0 : i32
    %c0_i32_0 = arith.constant 0 : i32
    %c0_i32_1 = arith.constant 0 : i32
    %c0_i32_2 = arith.constant 0 : i32
    return %c0_i32, %c0_i32_0, %c0_i32_1 : i32, i32, i32
  }
  func.func @transform_5(%arg0: i32, %arg1: i32, %arg2: i32) -> (i32, i32, i32) {
    %c0_i32 = arith.constant 0 : i32
    %c0_i32_0 = arith.constant 0 : i32
    %c0_i32_1 = arith.constant 0 : i32
    %c0_i32_2 = arith.constant 0 : i32
    return %c0_i32, %c0_i32_0, %c0_i32_1 : i32, i32, i32
  }
  func.func @transform_6(%arg0: i32, %arg1: i32, %arg2: i32) -> (i32, i32, i32) {
    %c0_i32 = arith.constant 0 : i32
    %c0_i32_0 = arith.constant 0 : i32
    %c0_i32_1 = arith.constant 0 : i32
    %c0_i32_2 = arith.constant 0 : i32
    return %c0_i32, %c0_i32_0, %c0_i32_1 : i32, i32, i32
  }
  func.func @transform_7(%arg0: i32, %arg1: i32, %arg2: i32) -> (i32, i32, i32) {
    %c0_i32 = arith.constant 0 : i32
    %c0_i32_0 = arith.constant 0 : i32
    %c0_i32_1 = arith.constant 0 : i32
    %c0_i32_2 = arith.constant 0 : i32
    return %c0_i32, %c0_i32_0, %c0_i32_1 : i32, i32, i32
  }
}

module attributes {stable_mosaic.version = 11 : i64} {
  func.func @_apply_kernel(%arg0: i32, %arg1: i32, %arg2: memref<1x4x256xf32, #tpu.memory_space<vmem>>, %arg3: memref<8x4xbf16, #tpu.memory_space<vmem>>, %arg4: memref<8x8xbf16, #tpu.memory_space<vmem>>, %arg5: memref<8x8xbf16, #tpu.memory_space<vmem>>, %arg6: memref<3x8x1xf32, #tpu.memory_space<vmem>>, %arg7: memref<3x8x1xf32, #tpu.memory_space<vmem>>, %arg8: memref<1x8x256xf32, #tpu.memory_space<vmem>>) attributes {dimension_semantics = [#tpu.dimension_semantics<parallel>, #tpu.dimension_semantics<parallel>], iteration_bounds = array<i64: 2, 1>, scalar_prefetch = 0 : i64, scratch_operands = 0 : i64, tpu.core_type = #tpu.core_type<tc>, window_params = [{transform_indices = @transform_0, window_bounds = array<i64: 1, 4, 256>}, {pipeline_mode = #tpu.pipeline_mode<synchronous>, transform_indices = @transform_1, window_bounds = array<i64: 8, 4>}, {pipeline_mode = #tpu.pipeline_mode<synchronous>, transform_indices = @transform_2, window_bounds = array<i64: 8, 8>}, {pipeline_mode = #tpu.pipeline_mode<synchronous>, transform_indices = @transform_3, window_bounds = array<i64: 8, 8>}, {pipeline_mode = #tpu.pipeline_mode<synchronous>, transform_indices = @transform_4, window_bounds = array<i64: 3, 8, 1>}, {pipeline_mode = #tpu.pipeline_mode<synchronous>, transform_indices = @transform_5, window_bounds = array<i64: 3, 8, 1>}, {transform_indices = @transform_6, window_bounds = array<i64: 1, 8, 256>}]} {
    %c0 = arith.constant 0 : index
    %c0_0 = arith.constant 0 : index
    %c0_1 = arith.constant 0 : index
    %0 = vector.load %arg2[%c0, %c0_0, %c0_1] : memref<1x4x256xf32, #tpu.memory_space<vmem>>, vector<1x4x256xf32>
    %1 = vector.shape_cast %0 : vector<1x4x256xf32> to vector<4x256xf32>
    %2 = arith.truncf %1 : vector<4x256xf32> to vector<4x256xbf16>
    %c0_2 = arith.constant 0 : index
    %c0_3 = arith.constant 0 : index
    %3 = vector.load %arg3[%c0_2, %c0_3] : memref<8x4xbf16, #tpu.memory_space<vmem>>, vector<8x4xbf16>
    %cst = arith.constant dense<0.000000e+00> : vector<8x256xf32>
    %4 = tpu.matmul %3, %2, %cst {dimension_numbers = #tpu.dot_dimension_numbers<[1], [0], [0], [1], [0, 0, 1, 1], [], []>} : vector<8x4xbf16>, vector<4x256xbf16>, vector<8x256xf32> -> vector<8x256xf32>
    %c0_4 = arith.constant 0 : index
    %c0_5 = arith.constant 0 : index
    %c0_6 = arith.constant 0 : index
    %5 = vector.load %arg6[%c0_4, %c0_5, %c0_6] : memref<3x8x1xf32, #tpu.memory_space<vmem>>, vector<1x8x1xf32>
    %6 = vector.shape_cast %5 : vector<1x8x1xf32> to vector<8x1xf32>
    %7 = vector.broadcast %6 : vector<8x1xf32> to vector<8x256xf32>
    %8 = arith.mulf %4, %7 : vector<8x256xf32>
    %c0_7 = arith.constant 0 : index
    %c0_8 = arith.constant 0 : index
    %c0_9 = arith.constant 0 : index
    %9 = vector.load %arg7[%c0_7, %c0_8, %c0_9] : memref<3x8x1xf32, #tpu.memory_space<vmem>>, vector<1x8x1xf32>
    %10 = vector.shape_cast %9 : vector<1x8x1xf32> to vector<8x1xf32>
    %11 = vector.broadcast %10 : vector<8x1xf32> to vector<8x256xf32>
    %12 = arith.addf %8, %11 : vector<8x256xf32>
    %cst_10 = arith.constant 0.000000e+00 : f32
    %13 = vector.broadcast %cst_10 : f32 to vector<8x256xf32>
    %14 = arith.cmpf oge, %12, %13 : vector<8x256xf32>
    %cst_11 = arith.constant 0.00999999977 : f32
    %15 = vector.broadcast %cst_11 : f32 to vector<8x256xf32>
    %16 = arith.mulf %15, %12 : vector<8x256xf32>
    %17 = arith.select %14, %12, %16 : vector<8x256xi1>, vector<8x256xf32>
    %c0_12 = arith.constant 0 : index
    %c0_13 = arith.constant 0 : index
    %18 = vector.load %arg4[%c0_12, %c0_13] : memref<8x8xbf16, #tpu.memory_space<vmem>>, vector<8x8xbf16>
    %19 = arith.truncf %17 : vector<8x256xf32> to vector<8x256xbf16>
    %cst_14 = arith.constant dense<0.000000e+00> : vector<8x256xf32>
    %20 = tpu.matmul %18, %19, %cst_14 {dimension_numbers = #tpu.dot_dimension_numbers<[1], [0], [0], [1], [0, 0, 1, 1], [], []>} : vector<8x8xbf16>, vector<8x256xbf16>, vector<8x256xf32> -> vector<8x256xf32>
    %c1 = arith.constant 1 : index
    %c0_15 = arith.constant 0 : index
    %c0_16 = arith.constant 0 : index
    %21 = vector.load %arg6[%c1, %c0_15, %c0_16] : memref<3x8x1xf32, #tpu.memory_space<vmem>>, vector<1x8x1xf32>
    %22 = vector.shape_cast %21 : vector<1x8x1xf32> to vector<8x1xf32>
    %23 = vector.broadcast %22 : vector<8x1xf32> to vector<8x256xf32>
    %24 = arith.mulf %20, %23 : vector<8x256xf32>
    %c1_17 = arith.constant 1 : index
    %c0_18 = arith.constant 0 : index
    %c0_19 = arith.constant 0 : index
    %25 = vector.load %arg7[%c1_17, %c0_18, %c0_19] : memref<3x8x1xf32, #tpu.memory_space<vmem>>, vector<1x8x1xf32>
    %26 = vector.shape_cast %25 : vector<1x8x1xf32> to vector<8x1xf32>
    %27 = vector.broadcast %26 : vector<8x1xf32> to vector<8x256xf32>
    %28 = arith.addf %24, %27 : vector<8x256xf32>
    %cst_20 = arith.constant 0.000000e+00 : f32
    %29 = vector.broadcast %cst_20 : f32 to vector<8x256xf32>
    %30 = arith.cmpf oge, %28, %29 : vector<8x256xf32>
    %cst_21 = arith.constant 0.00999999977 : f32
    %31 = vector.broadcast %cst_21 : f32 to vector<8x256xf32>
    %32 = arith.mulf %31, %28 : vector<8x256xf32>
    %33 = arith.select %30, %28, %32 : vector<8x256xi1>, vector<8x256xf32>
    %c0_22 = arith.constant 0 : index
    %c0_23 = arith.constant 0 : index
    %34 = vector.load %arg5[%c0_22, %c0_23] : memref<8x8xbf16, #tpu.memory_space<vmem>>, vector<8x8xbf16>
    %35 = arith.truncf %33 : vector<8x256xf32> to vector<8x256xbf16>
    %cst_24 = arith.constant dense<0.000000e+00> : vector<8x256xf32>
    %36 = tpu.matmul %34, %35, %cst_24 {dimension_numbers = #tpu.dot_dimension_numbers<[1], [0], [0], [1], [0, 0, 1, 1], [], []>} : vector<8x8xbf16>, vector<8x256xbf16>, vector<8x256xf32> -> vector<8x256xf32>
    %c2 = arith.constant 2 : index
    %c0_25 = arith.constant 0 : index
    %c0_26 = arith.constant 0 : index
    %37 = vector.load %arg6[%c2, %c0_25, %c0_26] : memref<3x8x1xf32, #tpu.memory_space<vmem>>, vector<1x8x1xf32>
    %38 = vector.shape_cast %37 : vector<1x8x1xf32> to vector<8x1xf32>
    %39 = vector.broadcast %38 : vector<8x1xf32> to vector<8x256xf32>
    %40 = arith.mulf %36, %39 : vector<8x256xf32>
    %c2_27 = arith.constant 2 : index
    %c0_28 = arith.constant 0 : index
    %c0_29 = arith.constant 0 : index
    %41 = vector.load %arg7[%c2_27, %c0_28, %c0_29] : memref<3x8x1xf32, #tpu.memory_space<vmem>>, vector<1x8x1xf32>
    %42 = vector.shape_cast %41 : vector<1x8x1xf32> to vector<8x1xf32>
    %43 = vector.broadcast %42 : vector<8x1xf32> to vector<8x256xf32>
    %44 = arith.addf %40, %43 : vector<8x256xf32>
    %45 = arith.addf %44, %17 : vector<8x256xf32>
    %c0_30 = arith.constant 0 : index
    %c0_31 = arith.constant 0 : index
    %c0_32 = arith.constant 0 : index
    %46 = vector.load %arg8[%c0_30, %c0_31, %c0_32] : memref<1x8x256xf32, #tpu.memory_space<vmem>>, vector<1x8x256xf32>
    %47 = vector.shape_cast %46 : vector<1x8x256xf32> to vector<8x256xf32>
    %48 = vector.shape_cast %45 : vector<8x256xf32> to vector<1x8x256xf32>
    tpu.vector_store %arg8[%c0_30, %c0_31, %c0_32], %48 {strides = array<i32>} : memref<1x8x256xf32, #tpu.memory_space<vmem>>, vector<1x8x256xf32>,
    return
  }
  func.func @transform_0(%arg0: i32, %arg1: i32) -> (i32, i32, i32) {
    %c0_i32 = arith.constant 0 : i32
    %c0_i32_0 = arith.constant 0 : i32
    return %arg0, %c0_i32, %arg1 : i32, i32, i32
  }
  func.func @transform_1(%arg0: i32, %arg1: i32) -> (i32, i32) {
    %c0_i32 = arith.constant 0 : i32
    %c0_i32_0 = arith.constant 0 : i32
    %c0_i32_1 = arith.constant 0 : i32
    return %c0_i32, %c0_i32_0 : i32, i32
  }
  func.func @transform_2(%arg0: i32, %arg1: i32) -> (i32, i32) {
    %c0_i32 = arith.constant 0 : i32
    %c0_i32_0 = arith.constant 0 : i32
    %c0_i32_1 = arith.constant 0 : i32
    return %c0_i32, %c0_i32_0 : i32, i32
  }
  func.func @transform_3(%arg0: i32, %arg1: i32) -> (i32, i32) {
    %c0_i32 = arith.constant 0 : i32
    %c0_i32_0 = arith.constant 0 : i32
    %c0_i32_1 = arith.constant 0 : i32
    return %c0_i32, %c0_i32_0 : i32, i32
  }
  func.func @transform_4(%arg0: i32, %arg1: i32) -> (i32, i32, i32) {
    %c0_i32 = arith.constant 0 : i32
    %c0_i32_0 = arith.constant 0 : i32
    %c0_i32_1 = arith.constant 0 : i32
    %c0_i32_2 = arith.constant 0 : i32
    return %c0_i32, %c0_i32_0, %c0_i32_1 : i32, i32, i32
  }
  func.func @transform_5(%arg0: i32, %arg1: i32) -> (i32, i32, i32) {
    %c0_i32 = arith.constant 0 : i32
    %c0_i32_0 = arith.constant 0 : i32
    %c0_i32_1 = arith.constant 0 : i32
    %c0_i32_2 = arith.constant 0 : i32
    return %c0_i32, %c0_i32_0, %c0_i32_1 : i32, i32, i32
  }
  func.func @transform_6(%arg0: i32, %arg1: i32) -> (i32, i32, i32) {
    %c0_i32 = arith.constant 0 : i32
    %c0_i32_0 = arith.constant 0 : i32
    return %arg0, %c0_i32, %arg1 : i32, i32, i32
  }
}

</mosaic_0001>

<llo_original>
// kernel: subspace_block.2
$region0: #{subspace_block.2}
  #allocation0 [shape = 'u32[]', space=smem, size = 0x4, offset = 0x4, fixed_abs, tag = 'smem constant byte address 0x4 - core index']
  #allocation1 [shape = 'u32[144,128]{1,0:T(1,128)}', space=vmem, size = 0x12000, scoped, tag = 'internal scratch']
  #allocation2 [shape = 'f32[3,8,1]{2,1,0:T(8,128)}', space=vmem, size = 0x3000, scoped, tag = 'scratch operand']
  #allocation3 [shape = 'f32[3,8,1]{2,1,0:T(8,128)}', space=vmem, size = 0x3000, scoped, tag = 'scratch operand']
  %s0 = inlined_call_operand.vmem [shape: f32[2,4,256], index: 0, kind: input, shape index: {}]
  %s1 = inlined_call_operand.vmem [shape: bf16[8,4], index: 1, kind: input, shape index: {}]
  %s2 = inlined_call_operand.vmem [shape: bf16[8,8], index: 2, kind: input, shape index: {}]
  %s3 = inlined_call_operand.vmem [shape: bf16[8,8], index: 3, kind: input, shape index: {}]
  %s4 = inlined_call_operand.vmem [shape: f32[3,8,1], index: 4, kind: input, shape index: {}]
  %s5 = inlined_call_operand.vmem [shape: f32[3,8,1], index: 5, kind: input, shape index: {}]
  %s6 = inlined_call_operand.vmem [shape: f32[3,8,1], index: 6, kind: output, shape index: {0}]
  %s7 = inlined_call_operand.vmem [shape: f32[3,8,1], index: 7, kind: output, shape index: {1}]
  %8 = xla_tuple %s6, %s7
  %s9 = sld [smem:[#allocation0]]
  $region85: #{subspace_block.2} parent=0
    _
  %s11 = ssub.s32 1, %s9
  %s12 = scalar_select 0, %s11, %s9
  loop: start=0, step=1, limit=8
  $region2: #{subspace_block.2} parent=0 // loop_pre_header
    _
  $region3: #{subspace_block.2} parent=0 // loop_header
    %s14 = sphi 0, %s18
    %p15 = scmp.ge.s32.totalorder %s14, 8
    %s21 = sphi 0, %s40
    %s22 = sphi 0, %s36
    %s23 = sphi 0, %s32
    %s24 = sphi 0, %s21
    %s25 = sphi 0, %s22
    %s26 = sphi 0, %s23
    %s27 = sphi 0, %s24
    %s28 = sphi 0, %s25
    %s29 = sphi 0, %s26
    %s45 = sphi 0, %s47
    %s48 = sphi 0, %s45
    %s49 = sphi 0, %s48
    %s65 = sphi 0, %s49
    %s69 = sphi 0, %s69
    %s71 = sphi 0, %s69
    %s72 = sphi 0, %s71
    %s86 = sphi 0, %s72
    %s90 = sphi 0, %s90
    %s92 = sphi 0, %s90
    %s93 = sphi 0, %s92
    %s107 = sphi 0, %s93
    %s111 = sphi 0, %s111
    %s113 = sphi 0, %s111
    %s114 = sphi 0, %s113
    %s128 = sphi 0, %s114
    %s132 = sphi 0, %s132
    %s134 = sphi 0, %s132
    %s135 = sphi 0, %s134
    %s149 = sphi 0, %s135
    %s153 = sphi 0, %s153
    %s155 = sphi 0, %s153
    %s156 = sphi 0, %s155
    %s170 = sphi 0, %s156
    %s174 = sphi 0, %s174
    %s176 = sphi 0, %s174
    %s177 = sphi 0, %s176
    %s191 = sphi 0, %s177
    %s195 = sphi 0, %s195
    %s197 = sphi 0, %s195
    %s198 = sphi 0, %s197
    %s212 = sphi 0, %s198
  $region4: #{subspace_block.2} parent=0 // loop_header_branch
    %17 = sbr.rel (%p15) target = $region8
  $region5: #{subspace_block.2} parent=0 // loop_body
    %s19 = ssub.s32 %s14, 1
    %s20 = ssub.s32 %s14, 2
    %s30 = sadd.s32 1, %s23
    %p31 = scmp.ge.s32.totalorder %s30, 1
    %s32 = scalar_select %p31, 0, %s30
    %s33 = sadd.s32 1, %s22
    %s34 = scalar_select %p31, %s33, %s22
    %p35 = scmp.ge.s32.totalorder %s34, 2
    %s36 = scalar_select %p35, 0, %s34
    %s37 = sadd.s32 1, %s21
    %s38 = scalar_select %p35, %s37, %s21
    %p39 = scmp.ge.s32.totalorder %s38, 3
    %s40 = scalar_select %p39, 0, %s38
    %s41 = ssub.s32 %s22, %s36
    %s42 = ssub.s32 %s23, %s32
    %s43 = sor.u32 %s41, %s42
    %p44 = scmp.eq.s32.totalorder %s43, 0
    %s46 = sadd.s32 %s45, 1
    %s47 = scalar_select %p44, %s45, %s46
    %p50 = pneg %p44
    %p51 = scmp.eq.s32.totalorder %s14, 5
    %p52 = por %p50, %p51
    %p53 = scmp.ne.s32.totalorder %s45, %s48
    %p54 = scmp.eq.s32.totalorder %s14, 0
    %p55 = por %p53, %p54
    %p56 = scmp.ne.s32.totalorder %s45, %s48
    %p57 = scmp.eq.s32.totalorder %s19, 5
    %p58 = por %p56, %p57
    %p59 = scmp.ne.s32.totalorder %s48, %s49
    %p60 = scmp.eq.s32.totalorder %s19, 0
    %p61 = por %p59, %p60
    %p62 = scmp.ne.s32.totalorder %s48, %s49
    %p63 = scmp.eq.s32.totalorder %s20, 5
    %p64 = por %p62, %p63
    %p66 = scmp.ne.s32.totalorder %s49, %s65
    %p67 = scmp.eq.s32.totalorder %s20, 0
    %p68 = por %p66, %p67
    %s70 = sadd.s32 %s69, 1
    %p73 = scmp.eq.s32.totalorder %s14, 5
    %p74 = scmp.ne.s32.totalorder %s69, %s71
    %p75 = scmp.eq.s32.totalorder %s14, 0
    %p76 = por %p74, %p75
    %p77 = scmp.ne.s32.totalorder %s69, %s71
    %p78 = scmp.eq.s32.totalorder %s19, 5
    %p79 = por %p77, %p78
    %p80 = scmp.ne.s32.totalorder %s71, %s72
    %p81 = scmp.eq.s32.totalorder %s19, 0
    %p82 = por %p80, %p81
    %p83 = scmp.ne.s32.totalorder %s71, %s72
    %p84 = scmp.eq.s32.totalorder %s20, 5
    %p85 = por %p83, %p84
    %p87 = scmp.ne.s32.totalorder %s72, %s86
    %p88 = scmp.eq.s32.totalorder %s20, 0
    %p89 = por %p87, %p88
    %s91 = sadd.s32 %s90, 1
    %p94 = scmp.eq.s32.totalorder %s14, 5
    %p95 = scmp.ne.s32.totalorder %s90, %s92
    %p96 = scmp.eq.s32.totalorder %s14, 0
    %p97 = por %p95, %p96
    %p98 = scmp.ne.s32.totalorder %s90, %s92
    %p99 = scmp.eq.s32.totalorder %s19, 5
    %p100 = por %p98, %p99
    %p101 = scmp.ne.s32.totalorder %s92, %s93
    %p102 = scmp.eq.s32.totalorder %s19, 0
    %p103 = por %p101, %p102
    %p104 = scmp.ne.s32.totalorder %s92, %s93
    %p105 = scmp.eq.s32.totalorder %s20, 5
    %p106 = por %p104, %p105
    %p108 = scmp.ne.s32.totalorder %s93, %s107
    %p109 = scmp.eq.s32.totalorder %s20, 0
    %p110 = por %p108, %p109
    %s112 = sadd.s32 %s111, 1
    %p115 = scmp.eq.s32.totalorder %s14, 5
    %p116 = scmp.ne.s32.totalorder %s111, %s113
    %p117 = scmp.eq.s32.totalorder %s14, 0
    %p118 = por %p116, %p117
    %p119 = scmp.ne.s32.totalorder %s111, %s113
    %p120 = scmp.eq.s32.totalorder %s19, 5
    %p121 = por %p119, %p120
    %p122 = scmp.ne.s32.totalorder %s113, %s114
    %p123 = scmp.eq.s32.totalorder %s19, 0
    %p124 = por %p122, %p123
    %p125 = scmp.ne.s32.totalorder %s113, %s114
    %p126 = scmp.eq.s32.totalorder %s20, 5
    %p127 = por %p125, %p126
    %p129 = scmp.ne.s32.totalorder %s114, %s128
    %p130 = scmp.eq.s32.totalorder %s20, 0
    %p131 = por %p129, %p130
    %s133 = sadd.s32 %s132, 1
    %p136 = scmp.eq.s32.totalorder %s14, 5
    %p137 = scmp.ne.s32.totalorder %s132, %s134
    %p138 = scmp.eq.s32.totalorder %s14, 0
    %p139 = por %p137, %p138
    %p140 = scmp.ne.s32.totalorder %s132, %s134
    %p141 = scmp.eq.s32.totalorder %s19, 5
    %p142 = por %p140, %p141
    %p143 = scmp.ne.s32.totalorder %s134, %s135
    %p144 = scmp.eq.s32.totalorder %s19, 0
    %p145 = por %p143, %p144
    %p146 = scmp.ne.s32.totalorder %s134, %s135
    %p147 = scmp.eq.s32.totalorder %s20, 5
    %p148 = por %p146, %p147
    %p150 = scmp.ne.s32.totalorder %s135, %s149
    %p151 = scmp.eq.s32.totalorder %s20, 0
    %p152 = por %p150, %p151
    %s154 = sadd.s32 %s153, 1
    %p157 = scmp.eq.s32.totalorder %s14, 5
    %p158 = scmp.ne.s32.totalorder %s153, %s155
    %p159 = scmp.eq.s32.totalorder %s14, 0
    %p160 = por %p158, %p159
    %p161 = scmp.ne.s32.totalorder %s153, %s155
    %p162 = scmp.eq.s32.totalorder %s19, 5
    %p163 = por %p161, %p162
    %p164 = scmp.ne.s32.totalorder %s155, %s156
    %p165 = scmp.eq.s32.totalorder %s19, 0
    %p166 = por %p164, %p165
    %p167 = scmp.ne.s32.totalorder %s155, %s156
    %p168 = scmp.eq.s32.totalorder %s20, 5
    %p169 = por %p167, %p168
    %p171 = scmp.ne.s32.totalorder %s156, %s170
    %p172 = scmp.eq.s32.totalorder %s20, 0
    %p173 = por %p171, %p172
    %s175 = sadd.s32 %s174, 1
    %p178 = scmp.eq.s32.totalorder %s14, 5
    %p179 = scmp.ne.s32.totalorder %s174, %s176
    %p180 = scmp.eq.s32.totalorder %s14, 0
    %p181 = por %p179, %p180
    %p182 = scmp.ne.s32.totalorder %s174, %s176
    %p183 = scmp.eq.s32.totalorder %s19, 5
    %p184 = por %p182, %p183
    %p185 = scmp.ne.s32.totalorder %s176, %s177
    %p186 = scmp.eq.s32.totalorder %s19, 0
    %p187 = por %p185, %p186
    %p188 = scmp.ne.s32.totalorder %s176, %s177
    %p189 = scmp.eq.s32.totalorder %s20, 5
    %p190 = por %p188, %p189
    %p192 = scmp.ne.s32.totalorder %s177, %s191
    %p193 = scmp.eq.s32.totalorder %s20, 0
    %p194 = por %p192, %p193
    %s196 = sadd.s32 %s195, 1
    %p199 = scmp.eq.s32.totalorder %s14, 5
    %p200 = scmp.ne.s32.totalorder %s195, %s197
    %p201 = scmp.eq.s32.totalorder %s14, 0
    %p202 = por %p200, %p201
    %p203 = scmp.ne.s32.totalorder %s195, %s197
    %p204 = scmp.eq.s32.totalorder %s19, 5
    %p205 = por %p203, %p204
    %p206 = scmp.ne.s32.totalorder %s197, %s198
    %p207 = scmp.eq.s32.totalorder %s19, 0
    %p208 = por %p206, %p207
    %p209 = scmp.ne.s32.totalorder %s197, %s198
    %p210 = scmp.eq.s32.totalorder %s20, 5
    %p211 = por %p209, %p210
    %p213 = scmp.ne.s32.totalorder %s198, %s212
    %p214 = scmp.eq.s32.totalorder %s20, 0
    %p215 = por %p213, %p214
    %p216 = scmp.le.s32.totalorder 1, %s14
    %p217 = scmp.lt.s32.totalorder %s14, 7
    %p218 = pnand %p216, %p217
    %p219 = pneg %p218
    // Predicated region
    $region9: #{subspace_block.2} parent=5 // pred_check
      _
    $region10: #{subspace_block.2} parent=5 // pred_check_branch
      %221 = sbr.rel (%p218) target = $region12
    $region11: #{subspace_block.2} parent=5 // pred_region
      %s222 = ssub.s32 %s14, 1
      // Predicated region
      $region13: #{subspace_block.2} parent=11 // pred_check
        %p223 = pneg %p82
      $region14: #{subspace_block.2} parent=11 // pred_check_branch
        %225 = sbr.rel (%p223) target = $region16
      $region15: #{subspace_block.2} parent=11 // pred_region
        _
      $region16: #{subspace_block.2} parent=11 // pred_fallthru
        _
      // Predicated region
      $region17: #{subspace_block.2} parent=11 // pred_check
        %p226 = pneg %p103
      $region18: #{subspace_block.2} parent=11 // pred_check_branch
        %228 = sbr.rel (%p226) target = $region20
      $region19: #{subspace_block.2} parent=11 // pred_region
        _
      $region20: #{subspace_block.2} parent=11 // pred_fallthru
        _
      // Predicated region
      $region21: #{subspace_block.2} parent=11 // pred_check
        %p229 = pneg %p124
      $region22: #{subspace_block.2} parent=11 // pred_check_branch
        %231 = sbr.rel (%p229) target = $region24
      $region23: #{subspace_block.2} parent=11 // pred_region
        _
      $region24: #{subspace_block.2} parent=11 // pred_fallthru
        _
      // Predicated region
      $region25: #{subspace_block.2} parent=11 // pred_check
        %p232 = pneg %p145
      $region26: #{subspace_block.2} parent=11 // pred_check_branch
        %234 = sbr.rel (%p232) target = $region28
      $region27: #{subspace_block.2} parent=11 // pred_region
        _
      $region28: #{subspace_block.2} parent=11 // pred_fallthru
        _
      // Predicated region
      $region29: #{subspace_block.2} parent=11 // pred_check
        %p235 = pneg %p166
      $region30: #{subspace_block.2} parent=11 // pred_check_branch
        %237 = sbr.rel (%p235) target = $region32
      $region31: #{subspace_block.2} parent=11 // pred_region
        _
      $region32: #{subspace_block.2} parent=11 // pred_fallthru
        _
    $region12: #{subspace_block.2} parent=5 // pred_fallthru
      _
    %p238 = scmp.lt.s32.totalorder %s14, 6
    // Predicated region
    $region33: #{subspace_block.2} parent=5 // pred_check
      %p239 = pneg %p238
    $region34: #{subspace_block.2} parent=5 // pred_check_branch
      %241 = sbr.rel (%p239) target = $region36
    $region35: #{subspace_block.2} parent=5 // pred_region
      // Predicated region
      $region37: #{subspace_block.2} parent=35 // pred_check
        %p242 = pneg %p55
      $region38: #{subspace_block.2} parent=35 // pred_check_branch
        %244 = sbr.rel (%p242) target = $region40
      $region39: #{subspace_block.2} parent=35 // pred_region
        %s245 = smul.u32 2, %s23
        %p246 = scmp.lt.s32.totalorder %s22, 1
        %s247 = scalar_select %p246, %s22, 1
        %p248 = scmp.lt.s32.totalorder %s245, 1
        %s249 = scalar_select %p248, %s245, 1
        %s250 = smul.addr %s247, 2
        %s251 = sadd.s32 %s249, %s250
        %s252 = smul.addr %s251, 4
        %s253 = scalar_lea.vmem %s0, %s252
        %s254 = smul.u32 2, %s23
      $region40: #{subspace_block.2} parent=35 // pred_fallthru
        _
    $region36: #{subspace_block.2} parent=5 // pred_fallthru
      _
    %p255 = scmp.le.s32.totalorder 1, %s14
    %p256 = scmp.lt.s32.totalorder %s14, 7
    %p257 = pnand %p255, %p256
    %p258 = pneg %p257
    // Predicated region
    $region41: #{subspace_block.2} parent=5 // pred_check
      _
    $region42: #{subspace_block.2} parent=5 // pred_check_branch
      %260 = sbr.rel (%p257) target = $region44
    $region43: #{subspace_block.2} parent=5 // pred_region
      %s261 = ssub.s32 %s14, 1
      %s262 = smul.u32 2, %s26
      %p263 = scmp.lt.s32.totalorder %s25, 1
      %s264 = scalar_select %p263, %s25, 1
      %p265 = scmp.lt.s32.totalorder %s262, 1
      %s266 = scalar_select %p265, %s262, 1
      %s267 = smul.addr %s264, 2
      %s268 = sadd.s32 %s266, %s267
      %s269 = smul.addr %s268, 4
      %s270 = scalar_lea.vmem %s0, %s269
      %p271 = pneg %p61
      %p272 = pneg %p58
      %p273 = pneg %p82
      %p274 = pneg %p79
      %p275 = pneg %p103
      %p276 = pneg %p100
      %p277 = pneg %p124
      %p278 = pneg %p121
      %p279 = pneg %p145
      %p280 = pneg %p142
      %p281 = pneg %p166
      %p282 = pneg %p163
      %p283 = pneg %p187
      %p284 = pneg %p184
      %p285 = pneg %p208
      %p286 = pneg %p205
      %s287 = smul.u32 2, %s26
      %p288 = scmp.lt.s32.totalorder %s25, 1
      %s289 = scalar_select %p288, %s25, 1
      %p290 = scmp.lt.s32.totalorder %s287, 1
      %s291 = scalar_select %p290, %s287, 1
      %s292 = smul.addr %s289, 2
      %s293 = sadd.s32 %s291, %s292
      %s294 = smul.addr %s293, 4
      %s295 = scalar_lea.vmem %s0, %s294
      %s296 = smul.u32 2, %s26
      %p298 = scmp.eq.s32.totalorder %s24, 0
      %p299 = scmp.eq.s32.totalorder %s25, 0
      %p300 = pnand %p298, %p299
      %p301 = pneg %p300
      %p302 = scmp.eq.s32.totalorder %s26, 0
      %p303 = pnand %p301, %p302
      %p304 = pneg %p303
      // Predicated region
      $region45: #{subspace_block.2} parent=43 // pred_check
        _
      $region46: #{subspace_block.2} parent=43 // pred_check_branch
        %306 = sbr.rel (%p303) target = $region48
      $region47: #{subspace_block.2} parent=43 // pred_region
        %vm307 = vcmask 7168
        %308 = vst.msk [vmem:[#allocation2] sm:$0xff] %vm307, 0.0
        %309 = vst.msk [vmem:[#allocation2 + $0x8] sm:$0xff] %vm307, 0.0
        %310 = vst.msk [vmem:[#allocation2 + $0x10] sm:$0xff] %vm307, 0.0
        %311 = vst.msk [vmem:[#allocation3] sm:$0xff] %vm307, 0.0
        %312 = vst.msk [vmem:[#allocation3 + $0x8] sm:$0xff] %vm307, 0.0
        %313 = vst.msk [vmem:[#allocation3 + $0x10] sm:$0xff] %vm307, 0.0
      $region48: #{subspace_block.2} parent=43 // pred_fallthru
        _
      %v314 = vld [vmem:[%s295] sm:$0xff]
      %v316 = vcombine.high %v314, %v314
      %v318 = vpack.c.bf16 %v314, %v314
      %v319 = vpack.c.bf16 %v316, %v316
      %v320 = vld [vmem:[%s1] sm:$0xf]
      %vm321 = vcmask 31744
      %v323 = vsel %vm321, %v320, 0
      %vm325 = vcmask 1041408
      %v327 = vsel %vm325, %v318, 0
      %v330 = vsel %vm325, %v319, 0
      %332 = vmatprep.subr.bf16.mxu0 0
      %333 = vmatpush1.bf16.msra.mxu0 0
      %334 = vmatprep.subr.bf16.mxu0 0
      %335 = vmatpush1.bf16.msra.mxu0 0
      %336 = vmatprep.subr.bf16.mxu0 0
      %337 = vmatpush1.bf16.msra.mxu0 0
      %338 = vmatprep.subr.bf16.mxu0 0
      %339 = vmatpush1.bf16.msra.mxu0 0
      %340 = vmatprep.subr.bf16.mxu0 0
      %341 = vmatpush1.bf16.msra.mxu0 0
      %342 = vmatprep.subr.bf16.mxu0 0
      %343 = vmatpush1.bf16.msra.mxu0 0
      %344 = vmatprep.subr.bf16.mxu0 0
      %345 = vmatpush1.bf16.msra.mxu0 0
      %346 = vmatprep.subr.bf16.mxu0 %v330
      %347 = vmatpush1.bf16.msra.mxu0 %v327
      %348 = vmatprep.subr.bf16.mxu0 0
      %349 = vmatpush2.bf16.msra.mxu0 0
      %350 = vmatprep.subr.bf16.mxu0 0
      %351 = vmatpush2.bf16.msra.mxu0 0
      %352 = vmatprep.subr.bf16.mxu0 0
      %353 = vmatpush2.bf16.msra.mxu0 0
      %354 = vmatprep.subr.bf16.mxu0 0
      %355 = vmatpush2.bf16.msra.mxu0 0
      %356 = vmatprep.subr.bf16.mxu0 0
      %357 = vmatpush2.bf16.msra.mxu0 0
      %358 = vmatprep.subr.bf16.mxu0 0
      %359 = vmatpush2.bf16.msra.mxu0 0
      %360 = vmatprep.subr.bf16.mxu0 0
      %361 = vmatpush2.bf16.msra.mxu0 0
      %362 = vmatprep.subr.bf16.mxu0 0
      %363 = vmatpush2.bf16.msra.mxu0 0
      %364 = vmatprep.mubr.bf16.mxu0 0
      %365 = vmatmul.mubr.bf16.gmra.mxu0 %v323
      %v366 = vpop.f32.mrf.mxu0
      %v367 = vadd.f32 0.0, %v366
      %v368 = vpop.f32.mrf.mxu0
      %v369 = vadd.f32 0.0, %v368
      %v370 = vpop.f32.mrf.mxu0
      %v371 = vpop.f32.mrf.mxu0
      %372 = vdwg.mxu0
      // Predicated region
      $region49: #{subspace_block.2} parent=43 // pred_check
        %p373 = pneg %p298
      $region50: #{subspace_block.2} parent=43 // pred_check_branch
        %375 = sbr.rel (%p373) target = $region52
      $region51: #{subspace_block.2} parent=43 // pred_region
        %v376 = vld [vmem:[#allocation2] sm:$0xff]
        %v377 = vadd.f32 %v367, %v369
        %378 = vadd.xlane.f32.xlu0 %v377
        %v379 = vpop.xlane.xlu0 %378
        %v380 = vadd.f32 %v376, %v379
        %vm381 = vcmask 7168
        %382 = vst.msk [vmem:[#allocation2] sm:$0xff] %vm381, %v380
        %v383 = vld [vmem:[#allocation3] sm:$0xff]
        %v384 = vmul.f32 %v367, %v367
        %v385 = vmul.f32 %v369, %v369
        %v386 = vadd.f32 %v384, %v385
        %387 = vadd.xlane.f32.xlu0 %v386
        %v388 = vpop.xlane.xlu0 %387
        %v389 = vadd.f32 %v383, %v388
        %390 = vst.msk [vmem:[#allocation3] sm:$0xff] %vm381, %v389
      $region52: #{subspace_block.2} parent=43 // pred_fallthru
        _
      %p391 = scmp.eq.s32.totalorder %s24, 1
      // Predicated region
      $region53: #{subspace_block.2} parent=43 // pred_check
        %p392 = pneg %p391
      $region54: #{subspace_block.2} parent=43 // pred_check_branch
        %394 = sbr.rel (%p392) target = $region56
      $region55: #{subspace_block.2} parent=43 // pred_region
        %v395 = vld [vmem:[#allocation2] sm:$0xff]
        %v396 = vmul.f32 %v395, 0.001953125
        %v397 = vld [vmem:[#allocation3] sm:$0xff]
        %v398 = vmul.f32 %v397, 0.001953125
        %v399 = vmul.f32 %v396, %v396
        %v400 = vsub.f32 %v398, %v399
        %v401 = vmax.f32 %v400, 0.0
        %v402 = vld [vmem:[%s4] sm:$0xff]
        %v403 = vadd.f32 %v401, 1e-05
        %v404 = vrsqrt.pop %v403
        %v405 = vmul.f32 %v402, %v404
        %v406 = vld [vmem:[%s5] sm:$0xff]
        %v407 = vmul.f32 %v396, %v405
        %v408 = vsub.f32 %v406, %v407
        %410 = vset.pattern.permute.xlu0 0
        %411 = vperm.xlu0 %410, %v405
        %v412 = vpop.permute.xlu0 %411
        %v414 = vmul.f32 %v367, %v412
        %v415 = vmul.f32 %v369, %v412
        %417 = vset.pattern.permute.xlu0 0
        %418 = vperm.xlu0 %417, %v408
        %v419 = vpop.permute.xlu0 %418
        %v421 = vadd.f32 %v414, %v419
        %v422 = vadd.f32 %v415, %v419
        %vm423 = vcmp.ge.f32.partialorder %v421, 0.0
        %vm424 = vcmp.ge.f32.partialorder %v422, 0.0
        %v425 = vmul.f32 %v421, 0.01
        %v426 = vmul.f32 %v422, 0.01
        %v427 = vsel %vm423, %v421, %v425
        %v428 = vsel %vm424, %v422, %v426
        %v429 = vld [vmem:[%s2] sm:$0xf]
        %v430 = vpack.c.bf16 %v427, %v427
        %v431 = vpack.c.bf16 %v428, %v428
        %vm432 = vcmask 64512
        %v434 = vsel %vm432, %v429, 0
        %vm436 = vcmask 1043456
        %v438 = vsel %vm436, %v430, 0
        %v441 = vsel %vm436, %v431, 0
        %443 = vmatprep.subr.bf16.mxu0 0
        %444 = vmatpush1.bf16.msra.mxu0 0
        %445 = vmatprep.subr.bf16.mxu0 0
        %446 = vmatpush1.bf16.msra.mxu0 0
        %447 = vmatprep.subr.bf16.mxu0 0
        %448 = vmatpush1.bf16.msra.mxu0 0
        %449 = vmatprep.subr.bf16.mxu0 0
        %450 = vmatpush1.bf16.msra.mxu0 0
        %451 = vmatprep.subr.bf16.mxu0 0
        %452 = vmatpush1.bf16.msra.mxu0 0
        %453 = vmatprep.subr.bf16.mxu0 0
        %454 = vmatpush1.bf16.msra.mxu0 0
        %455 = vmatprep.subr.bf16.mxu0 0
        %456 = vmatpush1.bf16.msra.mxu0 0
        %457 = vmatprep.subr.bf16.mxu0 %v441
        %458 = vmatpush1.bf16.msra.mxu0 %v438
        %459 = vmatprep.subr.bf16.mxu0 0
        %460 = vmatpush2.bf16.msra.mxu0 0
        %461 = vmatprep.subr.bf16.mxu0 0
        %462 = vmatpush2.bf16.msra.mxu0 0
        %463 = vmatprep.subr.bf16.mxu0 0
        %464 = vmatpush2.bf16.msra.mxu0 0
        %465 = vmatprep.subr.bf16.mxu0 0
        %466 = vmatpush2.bf16.msra.mxu0 0
        %467 = vmatprep.subr.bf16.mxu0 0
        %468 = vmatpush2.bf16.msra.mxu0 0
        %469 = vmatprep.subr.bf16.mxu0 0
        %470 = vmatpush2.bf16.msra.mxu0 0
        %471 = vmatprep.subr.bf16.mxu0 0
        %472 = vmatpush2.bf16.msra.mxu0 0
        %473 = vmatprep.subr.bf16.mxu0 0
        %474 = vmatpush2.bf16.msra.mxu0 0
        %475 = vmatprep.mubr.bf16.mxu0 0
        %476 = vmatmul.mubr.bf16.gmra.mxu0 %v434
        %v477 = vpop.f32.mrf.mxu0
        %v478 = vadd.f32 0.0, %v477
        %v479 = vpop.f32.mrf.mxu0
        %v480 = vadd.f32 0.0, %v479
        %v481 = vpop.f32.mrf.mxu0
        %v482 = vpop.f32.mrf.mxu0
        %483 = vdwg.mxu0
        %s484 = scalar_lea.vmem [#allocation2], 8
        %v485 = vld [vmem:[%s484] sm:$0xff]
        %v486 = vadd.f32 %v478, %v480
        %487 = vadd.xlane.f32.xlu0 %v486
        %v488 = vpop.xlane.xlu0 %487
        %v489 = vadd.f32 %v485, %v488
        %vm490 = vcmask 7168
        %491 = vst.msk [vmem:[%s484] sm:$0xff] %vm490, %v489
        %s492 = scalar_lea.vmem [#allocation3], 8
        %v493 = vld [vmem:[%s492] sm:$0xff]
        %v494 = vmul.f32 %v478, %v478
        %v495 = vmul.f32 %v480, %v480
        %v496 = vadd.f32 %v494, %v495
        %497 = vadd.xlane.f32.xlu0 %v496
        %v498 = vpop.xlane.xlu0 %497
        %v499 = vadd.f32 %v493, %v498
        %500 = vst.msk [vmem:[%s492] sm:$0xff] %vm490, %v499
      $region56: #{subspace_block.2} parent=43 // pred_fallthru
        _
      %p501 = scmp.eq.s32.totalorder %s24, 2
      // Predicated region
      $region57: #{subspace_block.2} parent=43 // pred_check
        %p502 = pneg %p501
      $region58: #{subspace_block.2} parent=43 // pred_check_branch
        %504 = sbr.rel (%p502) target = $region60
      $region59: #{subspace_block.2} parent=43 // pred_region
        %v505 = vld [vmem:[#allocation2] sm:$0xff]
        %v506 = vmul.f32 %v505, 0.001953125
        %v507 = vld [vmem:[#allocation3] sm:$0xff]
        %v508 = vmul.f32 %v507, 0.001953125
        %v509 = vmul.f32 %v506, %v506
        %v510 = vsub.f32 %v508, %v509
        %v511 = vmax.f32 %v510, 0.0
        %v512 = vld [vmem:[%s4] sm:$0xff]
        %v513 = vadd.f32 %v511, 1e-05
        %v514 = vrsqrt.pop %v513
        %v515 = vmul.f32 %v512, %v514
        %v516 = vld [vmem:[%s5] sm:$0xff]
        %v517 = vmul.f32 %v506, %v515
        %v518 = vsub.f32 %v516, %v517
        %520 = vset.pattern.permute.xlu0 0
        %521 = vperm.xlu0 %520, %v515
        %v522 = vpop.permute.xlu0 %521
        %v524 = vmul.f32 %v367, %v522
        %v525 = vmul.f32 %v369, %v522
        %527 = vset.pattern.permute.xlu0 0
        %528 = vperm.xlu0 %527, %v518
        %v529 = vpop.permute.xlu0 %528
        %v531 = vadd.f32 %v524, %v529
        %v532 = vadd.f32 %v525, %v529
        %vm533 = vcmp.ge.f32.partialorder %v531, 0.0
        %vm534 = vcmp.ge.f32.partialorder %v532, 0.0
        %v535 = vmul.f32 %v531, 0.01
        %v536 = vmul.f32 %v532, 0.01
        %v537 = vsel %vm533, %v531, %v535
        %v538 = vsel %vm534, %v532, %v536
        %v539 = vld [vmem:[%s2] sm:$0xf]
        %v540 = vpack.c.bf16 %v537, %v537
        %v541 = vpack.c.bf16 %v538, %v538
        %vm542 = vcmask 64512
        %v544 = vsel %vm542, %v539, 0
        %vm546 = vcmask 1043456
        %v548 = vsel %vm546, %v540, 0
        %v551 = vsel %vm546, %v541, 0
        %553 = vmatprep.subr.bf16.mxu0 0
        %554 = vmatpush1.bf16.msra.mxu0 0
        %555 = vmatprep.subr.bf16.mxu0 0
        %556 = vmatpush1.bf16.msra.mxu0 0
        %557 = vmatprep.subr.bf16.mxu0 0
        %558 = vmatpush1.bf16.msra.mxu0 0
        %559 = vmatprep.subr.bf16.mxu0 0
        %560 = vmatpush1.bf16.msra.mxu0 0
        %561 = vmatprep.subr.bf16.mxu0 0
        %562 = vmatpush1.bf16.msra.mxu0 0
        %563 = vmatprep.subr.bf16.mxu0 0
        %564 = vmatpush1.bf16.msra.mxu0 0
        %565 = vmatprep.subr.bf16.mxu0 0
        %566 = vmatpush1.bf16.msra.mxu0 0
        %567 = vmatprep.subr.bf16.mxu0 %v551
        %568 = vmatpush1.bf16.msra.mxu0 %v548
        %569 = vmatprep.subr.bf16.mxu0 0
        %570 = vmatpush2.bf16.msra.mxu0 0
        %571 = vmatprep.subr.bf16.mxu0 0
        %572 = vmatpush2.bf16.msra.mxu0 0
        %573 = vmatprep.subr.bf16.mxu0 0
        %574 = vmatpush2.bf16.msra.mxu0 0
        %575 = vmatprep.subr.bf16.mxu0 0
        %576 = vmatpush2.bf16.msra.mxu0 0
        %577 = vmatprep.subr.bf16.mxu0 0
        %578 = vmatpush2.bf16.msra.mxu0 0
        %579 = vmatprep.subr.bf16.mxu0 0
        %580 = vmatpush2.bf16.msra.mxu0 0
        %581 = vmatprep.subr.bf16.mxu0 0
        %582 = vmatpush2.bf16.msra.mxu0 0
        %583 = vmatprep.subr.bf16.mxu0 0
        %584 = vmatpush2.bf16.msra.mxu0 0
        %585 = vmatprep.mubr.bf16.mxu0 0
        %586 = vmatmul.mubr.bf16.gmra.mxu0 %v544
        %v587 = vpop.f32.mrf.mxu0
        %v588 = vadd.f32 0.0, %v587
        %v589 = vpop.f32.mrf.mxu0
        %v590 = vadd.f32 0.0, %v589
        %v591 = vpop.f32.mrf.mxu0
        %v592 = vpop.f32.mrf.mxu0
        %593 = vdwg.mxu0
        %s594 = scalar_lea.vmem [#allocation2], 8
        %v595 = vld [vmem:[%s594] sm:$0xff]
        %v596 = vmul.f32 %v595, 0.001953125
        %s597 = scalar_lea.vmem [#allocation3], 8
        %v598 = vld [vmem:[%s597] sm:$0xff]
        %v599 = vmul.f32 %v598, 0.001953125
        %v600 = vmul.f32 %v596, %v596
        %v601 = vsub.f32 %v599, %v600
        %v602 = vmax.f32 %v601, 0.0
        %s603 = scalar_lea.vmem %s4, 8
        %v604 = vld [vmem:[%s603] sm:$0xff]
        %v605 = vadd.f32 %v602, 1e-05
        %v606 = vrsqrt.pop %v605
        %v607 = vmul.f32 %v604, %v606
        %s608 = scalar_lea.vmem %s5, 8
        %v609 = vld [vmem:[%s608] sm:$0xff]
        %v610 = vmul.f32 %v596, %v607
        %v611 = vsub.f32 %v609, %v610
        %613 = vset.pattern.permute.xlu0 0
        %614 = vperm.xlu0 %613, %v607
        %v615 = vpop.permute.xlu0 %614
        %v617 = vmul.f32 %v588, %v615
        %v618 = vmul.f32 %v590, %v615
        %620 = vset.pattern.permute.xlu0 0
        %621 = vperm.xlu0 %620, %v611
        %v622 = vpop.permute.xlu0 %621
        %v624 = vadd.f32 %v617, %v622
        %v625 = vadd.f32 %v618, %v622
        %vm626 = vcmp.ge.f32.partialorder %v624, 0.0
        %vm627 = vcmp.ge.f32.partialorder %v625, 0.0
        %v628 = vmul.f32 %v624, 0.01
        %v629 = vmul.f32 %v625, 0.01
        %v630 = vsel %vm626, %v624, %v628
        %v631 = vsel %vm627, %v625, %v629
        %v632 = vld [vmem:[%s3] sm:$0xf]
        %v633 = vpack.c.bf16 %v630, %v630
        %v634 = vpack.c.bf16 %v631, %v631
        %v636 = vsel %vm542, %v632, 0
        %v639 = vsel %vm546, %v633, 0
        %v642 = vsel %vm546, %v634, 0
        %644 = vmatprep.subr.bf16.mxu0 0
        %645 = vmatpush1.bf16.msra.mxu0 0
        %646 = vmatprep.subr.bf16.mxu0 0
        %647 = vmatpush1.bf16.msra.mxu0 0
        %648 = vmatprep.subr.bf16.mxu0 0
        %649 = vmatpush1.bf16.msra.mxu0 0
        %650 = vmatprep.subr.bf16.mxu0 0
        %651 = vmatpush1.bf16.msra.mxu0 0
        %652 = vmatprep.subr.bf16.mxu0 0
        %653 = vmatpush1.bf16.msra.mxu0 0
        %654 = vmatprep.subr.bf16.mxu0 0
        %655 = vmatpush1.bf16.msra.mxu0 0
        %656 = vmatprep.subr.bf16.mxu0 0
        %657 = vmatpush1.bf16.msra.mxu0 0
        %658 = vmatprep.subr.bf16.mxu0 %v642
        %659 = vmatpush1.bf16.msra.mxu0 %v639
        %660 = vmatprep.subr.bf16.mxu0 0
        %661 = vmatpush2.bf16.msra.mxu0 0
        %662 = vmatprep.subr.bf16.mxu0 0
        %663 = vmatpush2.bf16.msra.mxu0 0
        %664 = vmatprep.subr.bf16.mxu0 0
        %665 = vmatpush2.bf16.msra.mxu0 0
        %666 = vmatprep.subr.bf16.mxu0 0
        %667 = vmatpush2.bf16.msra.mxu0 0
        %668 = vmatprep.subr.bf16.mxu0 0
        %669 = vmatpush2.bf16.msra.mxu0 0
        %670 = vmatprep.subr.bf16.mxu0 0
        %671 = vmatpush2.bf16.msra.mxu0 0
        %672 = vmatprep.subr.bf16.mxu0 0
        %673 = vmatpush2.bf16.msra.mxu0 0
        %674 = vmatprep.subr.bf16.mxu0 0
        %675 = vmatpush2.bf16.msra.mxu0 0
        %676 = vmatprep.mubr.bf16.mxu0 0
        %677 = vmatmul.mubr.bf16.gmra.mxu0 %v636
        %v678 = vpop.f32.mrf.mxu0
        %v679 = vadd.f32 0.0, %v678
        %v680 = vpop.f32.mrf.mxu0
        %v681 = vadd.f32 0.0, %v680
        %v682 = vpop.f32.mrf.mxu0
        %v683 = vpop.f32.mrf.mxu0
        %684 = vdwg.mxu0
        %s685 = scalar_lea.vmem [#allocation2], 16
        %v686 = vld [vmem:[%s685] sm:$0xff]
        %v687 = vadd.f32 %v679, %v681
        %688 = vadd.xlane.f32.xlu0 %v687
        %v689 = vpop.xlane.xlu0 %688
        %v690 = vadd.f32 %v686, %v689
        %vm691 = vcmask 7168
        %692 = vst.msk [vmem:[%s685] sm:$0xff] %vm691, %v690
        %s693 = scalar_lea.vmem [#allocation3], 16
        %v694 = vld [vmem:[%s693] sm:$0xff]
        %v695 = vmul.f32 %v679, %v679
        %v696 = vmul.f32 %v681, %v681
        %v697 = vadd.f32 %v695, %v696
        %698 = vadd.xlane.f32.xlu0 %v697
        %v699 = vpop.xlane.xlu0 %698
        %v700 = vadd.f32 %v694, %v699
        %701 = vst.msk [vmem:[%s693] sm:$0xff] %vm691, %v700
      $region60: #{subspace_block.2} parent=43 // pred_fallthru
        _
      %p702 = scmp.eq.s32.totalorder %s25, 1
      %p703 = pnand %p501, %p702
      %p704 = pneg %p703
      %p705 = pnand %p704, %p302
      %p706 = pneg %p705
      // Predicated region
      $region61: #{subspace_block.2} parent=43 // pred_check
        _
      $region62: #{subspace_block.2} parent=43 // pred_check_branch
        %708 = sbr.rel (%p705) target = $region64
      $region63: #{subspace_block.2} parent=43 // pred_region
        %v709 = vld [vmem:[#allocation2] sm:$0xff]
        %v710 = vld [vmem:[#allocation2 + $0x8] sm:$0xff]
        %v711 = vld [vmem:[#allocation2 + $0x10] sm:$0xff]
        %vm712 = vcmask 7168
        %713 = vst.msk [vmem:[%s6] sm:$0xff] %vm712, %v709
        %714 = vst.msk [vmem:[%s6 + $0x8] sm:$0xff] %vm712, %v710
        %715 = vst.msk [vmem:[%s6 + $0x10] sm:$0xff] %vm712, %v711
        %v716 = vld [vmem:[#allocation3] sm:$0xff]
        %v717 = vld [vmem:[#allocation3 + $0x8] sm:$0xff]
        %v718 = vld [vmem:[#allocation3 + $0x10] sm:$0xff]
        %719 = vst.msk [vmem:[%s7] sm:$0xff] %vm712, %v716
        %720 = vst.msk [vmem:[%s7 + $0x8] sm:$0xff] %vm712, %v717
        %721 = vst.msk [vmem:[%s7 + $0x10] sm:$0xff] %vm712, %v718
      $region64: #{subspace_block.2} parent=43 // pred_fallthru
        _
      // Predicated region
      $region65: #{subspace_block.2} parent=43 // pred_check
        %p722 = pneg %p184
      $region66: #{subspace_block.2} parent=43 // pred_check_branch
        %724 = sbr.rel (%p722) target = $region68
      $region67: #{subspace_block.2} parent=43 // pred_region
        _
      $region68: #{subspace_block.2} parent=43 // pred_fallthru
        _
      // Predicated region
      $region69: #{subspace_block.2} parent=43 // pred_check
        %p725 = pneg %p205
      $region70: #{subspace_block.2} parent=43 // pred_check_branch
        %727 = sbr.rel (%p725) target = $region72
      $region71: #{subspace_block.2} parent=43 // pred_region
        _
      $region72: #{subspace_block.2} parent=43 // pred_fallthru
        _
      // Predicated region
      $region73: #{subspace_block.2} parent=43 // pred_check
        %p728 = pneg %p184
      $region74: #{subspace_block.2} parent=43 // pred_check_branch
        %730 = sbr.rel (%p728) target = $region76
      $region75: #{subspace_block.2} parent=43 // pred_region
        _
      $region76: #{subspace_block.2} parent=43 // pred_fallthru
        _
      // Predicated region
      $region77: #{subspace_block.2} parent=43 // pred_check
        %p731 = pneg %p205
      $region78: #{subspace_block.2} parent=43 // pred_check_branch
        %733 = sbr.rel (%p731) target = $region80
      $region79: #{subspace_block.2} parent=43 // pred_region
        _
      $region80: #{subspace_block.2} parent=43 // pred_fallthru
        _
    $region44: #{subspace_block.2} parent=5 // pred_fallthru
      _
    %p734 = scmp.le.s32.totalorder 2, %s14
    // Predicated region
    $region81: #{subspace_block.2} parent=5 // pred_check
      %p735 = pneg %p734
    $region82: #{subspace_block.2} parent=5 // pred_check_branch
      %737 = sbr.rel (%p735) target = $region84
    $region83: #{subspace_block.2} parent=5 // pred_region
      %s738 = ssub.s32 %s14, 2
    $region84: #{subspace_block.2} parent=5 // pred_fallthru
      _
  $region6: #{subspace_block.2} parent=0 // loop_footer
    %s18 = sadd.s32 1, %s14
  $region7: #{subspace_block.2} parent=0 // loop_footer_branch
    %13 = sbr.rel target = $region3
  $region8: #{subspace_block.2} parent=0 // loop_exit
    _

// kernel: subspace_block.3
$region0: #{subspace_block.3}
  #allocation0 [shape = 'u32[]', space=smem, size = 0x4, offset = 0x4, fixed_abs, tag = 'smem constant byte address 0x4 - core index']
  #allocation1 [shape = 'u32[144,128]{1,0:T(1,128)}', space=vmem, size = 0x12000, scoped, tag = 'internal scratch']
  %s0 = inlined_call_operand.vmem [shape: f32[2,4,256], index: 0, kind: input, shape index: {}]
  %s1 = inlined_call_operand.vmem [shape: bf16[8,4], index: 1, kind: input, shape index: {}]
  %s2 = inlined_call_operand.vmem [shape: bf16[8,8], index: 2, kind: input, shape index: {}]
  %s3 = inlined_call_operand.vmem [shape: bf16[8,8], index: 3, kind: input, shape index: {}]
  %s4 = inlined_call_operand.vmem [shape: f32[3,8,1], index: 4, kind: input, shape index: {}]
  %s5 = inlined_call_operand.vmem [shape: f32[3,8,1], index: 5, kind: input, shape index: {}]
  %s6 = inlined_call_operand.vmem [shape: f32[2,8,256], index: 6, kind: output, shape index: {}]
  %s7 = sld [smem:[#allocation0]]
  $region57: #{subspace_block.3} parent=0
    _
  %s9 = ssub.s32 1, %s7
  %s10 = scalar_select 0, %s9, %s7
  loop: start=0, step=1, limit=4
  $region2: #{subspace_block.3} parent=0 // loop_pre_header
    _
  $region3: #{subspace_block.3} parent=0 // loop_header
    %s12 = sphi 0, %s16
    %p13 = scmp.ge.s32.totalorder %s12, 4
    %s19 = sphi 0, %s31
    %s20 = sphi 0, %s27
    %s21 = sphi 0, %s19
    %s22 = sphi 0, %s20
    %s23 = sphi 0, %s21
    %s24 = sphi 0, %s22
    %s36 = sphi 0, %s38
    %s39 = sphi 0, %s36
    %s40 = sphi 0, %s39
    %s56 = sphi 0, %s40
    %s60 = sphi 0, %s60
    %s62 = sphi 0, %s60
    %s63 = sphi 0, %s62
    %s77 = sphi 0, %s63
    %s81 = sphi 0, %s81
    %s83 = sphi 0, %s81
    %s84 = sphi 0, %s83
    %s98 = sphi 0, %s84
    %s102 = sphi 0, %s102
    %s104 = sphi 0, %s102
    %s105 = sphi 0, %s104
    %s119 = sphi 0, %s105
    %s123 = sphi 0, %s123
    %s125 = sphi 0, %s123
    %s126 = sphi 0, %s125
    %s140 = sphi 0, %s126
    %s144 = sphi 0, %s144
    %s146 = sphi 0, %s144
    %s147 = sphi 0, %s146
    %s161 = sphi 0, %s147
    %s169 = sphi 0, %s171
    %s172 = sphi 0, %s169
    %s173 = sphi 0, %s172
    %s189 = sphi 0, %s173
  $region4: #{subspace_block.3} parent=0 // loop_header_branch
    %15 = sbr.rel (%p13) target = $region8
  $region5: #{subspace_block.3} parent=0 // loop_body
    %s17 = ssub.s32 %s12, 1
    %s18 = ssub.s32 %s12, 2
    %s25 = sadd.s32 1, %s20
    %p26 = scmp.ge.s32.totalorder %s25, 1
    %s27 = scalar_select %p26, 0, %s25
    %s28 = sadd.s32 1, %s19
    %s29 = scalar_select %p26, %s28, %s19
    %p30 = scmp.ge.s32.totalorder %s29, 2
    %s31 = scalar_select %p30, 0, %s29
    %s32 = ssub.s32 %s19, %s31
    %s33 = ssub.s32 %s20, %s27
    %s34 = sor.u32 %s32, %s33
    %p35 = scmp.eq.s32.totalorder %s34, 0
    %s37 = sadd.s32 %s36, 1
    %s38 = scalar_select %p35, %s36, %s37
    %p41 = pneg %p35
    %p42 = scmp.eq.s32.totalorder %s12, 1
    %p43 = por %p41, %p42
    %p44 = scmp.ne.s32.totalorder %s36, %s39
    %p45 = scmp.eq.s32.totalorder %s12, 0
    %p46 = por %p44, %p45
    %p47 = scmp.ne.s32.totalorder %s36, %s39
    %p48 = scmp.eq.s32.totalorder %s17, 1
    %p49 = por %p47, %p48
    %p50 = scmp.ne.s32.totalorder %s39, %s40
    %p51 = scmp.eq.s32.totalorder %s17, 0
    %p52 = por %p50, %p51
    %p53 = scmp.ne.s32.totalorder %s39, %s40
    %p54 = scmp.eq.s32.totalorder %s18, 1
    %p55 = por %p53, %p54
    %p57 = scmp.ne.s32.totalorder %s40, %s56
    %p58 = scmp.eq.s32.totalorder %s18, 0
    %p59 = por %p57, %p58
    %s61 = sadd.s32 %s60, 1
    %p64 = scmp.eq.s32.totalorder %s12, 1
    %p65 = scmp.ne.s32.totalorder %s60, %s62
    %p66 = scmp.eq.s32.totalorder %s12, 0
    %p67 = por %p65, %p66
    %p68 = scmp.ne.s32.totalorder %s60, %s62
    %p69 = scmp.eq.s32.totalorder %s17, 1
    %p70 = por %p68, %p69
    %p71 = scmp.ne.s32.totalorder %s62, %s63
    %p72 = scmp.eq.s32.totalorder %s17, 0
    %p73 = por %p71, %p72
    %p74 = scmp.ne.s32.totalorder %s62, %s63
    %p75 = scmp.eq.s32.totalorder %s18, 1
    %p76 = por %p74, %p75
    %p78 = scmp.ne.s32.totalorder %s63, %s77
    %p79 = scmp.eq.s32.totalorder %s18, 0
    %p80 = por %p78, %p79
    %s82 = sadd.s32 %s81, 1
    %p85 = scmp.eq.s32.totalorder %s12, 1
    %p86 = scmp.ne.s32.totalorder %s81, %s83
    %p87 = scmp.eq.s32.totalorder %s12, 0
    %p88 = por %p86, %p87
    %p89 = scmp.ne.s32.totalorder %s81, %s83
    %p90 = scmp.eq.s32.totalorder %s17, 1
    %p91 = por %p89, %p90
    %p92 = scmp.ne.s32.totalorder %s83, %s84
    %p93 = scmp.eq.s32.totalorder %s17, 0
    %p94 = por %p92, %p93
    %p95 = scmp.ne.s32.totalorder %s83, %s84
    %p96 = scmp.eq.s32.totalorder %s18, 1
    %p97 = por %p95, %p96
    %p99 = scmp.ne.s32.totalorder %s84, %s98
    %p100 = scmp.eq.s32.totalorder %s18, 0
    %p101 = por %p99, %p100
    %s103 = sadd.s32 %s102, 1
    %p106 = scmp.eq.s32.totalorder %s12, 1
    %p107 = scmp.ne.s32.totalorder %s102, %s104
    %p108 = scmp.eq.s32.totalorder %s12, 0
    %p109 = por %p107, %p108
    %p110 = scmp.ne.s32.totalorder %s102, %s104
    %p111 = scmp.eq.s32.totalorder %s17, 1
    %p112 = por %p110, %p111
    %p113 = scmp.ne.s32.totalorder %s104, %s105
    %p114 = scmp.eq.s32.totalorder %s17, 0
    %p115 = por %p113, %p114
    %p116 = scmp.ne.s32.totalorder %s104, %s105
    %p117 = scmp.eq.s32.totalorder %s18, 1
    %p118 = por %p116, %p117
    %p120 = scmp.ne.s32.totalorder %s105, %s119
    %p121 = scmp.eq.s32.totalorder %s18, 0
    %p122 = por %p120, %p121
    %s124 = sadd.s32 %s123, 1
    %p127 = scmp.eq.s32.totalorder %s12, 1
    %p128 = scmp.ne.s32.totalorder %s123, %s125
    %p129 = scmp.eq.s32.totalorder %s12, 0
    %p130 = por %p128, %p129
    %p131 = scmp.ne.s32.totalorder %s123, %s125
    %p132 = scmp.eq.s32.totalorder %s17, 1
    %p133 = por %p131, %p132
    %p134 = scmp.ne.s32.totalorder %s125, %s126
    %p135 = scmp.eq.s32.totalorder %s17, 0
    %p136 = por %p134, %p135
    %p137 = scmp.ne.s32.totalorder %s125, %s126
    %p138 = scmp.eq.s32.totalorder %s18, 1
    %p139 = por %p137, %p138
    %p141 = scmp.ne.s32.totalorder %s126, %s140
    %p142 = scmp.eq.s32.totalorder %s18, 0
    %p143 = por %p141, %p142
    %s145 = sadd.s32 %s144, 1
    %p148 = scmp.eq.s32.totalorder %s12, 1
    %p149 = scmp.ne.s32.totalorder %s144, %s146
    %p150 = scmp.eq.s32.totalorder %s12, 0
    %p151 = por %p149, %p150
    %p152 = scmp.ne.s32.totalorder %s144, %s146
    %p153 = scmp.eq.s32.totalorder %s17, 1
    %p154 = por %p152, %p153
    %p155 = scmp.ne.s32.totalorder %s146, %s147
    %p156 = scmp.eq.s32.totalorder %s17, 0
    %p157 = por %p155, %p156
    %p158 = scmp.ne.s32.totalorder %s146, %s147
    %p159 = scmp.eq.s32.totalorder %s18, 1
    %p160 = por %p158, %p159
    %p162 = scmp.ne.s32.totalorder %s147, %s161
    %p163 = scmp.eq.s32.totalorder %s18, 0
    %p164 = por %p162, %p163
    %s165 = ssub.s32 %s19, %s31
    %s166 = ssub.s32 %s20, %s27
    %s167 = sor.u32 %s165, %s166
    %p168 = scmp.eq.s32.totalorder %s167, 0
    %s170 = sadd.s32 %s169, 1
    %s171 = scalar_select %p168, %s169, %s170
    %p174 = pneg %p168
    %p175 = scmp.eq.s32.totalorder %s12, 1
    %p176 = por %p174, %p175
    %p177 = scmp.ne.s32.totalorder %s169, %s172
    %p178 = scmp.eq.s32.totalorder %s12, 0
    %p179 = por %p177, %p178
    %p180 = scmp.ne.s32.totalorder %s169, %s172
    %p181 = scmp.eq.s32.totalorder %s17, 1
    %p182 = por %p180, %p181
    %p183 = scmp.ne.s32.totalorder %s172, %s173
    %p184 = scmp.eq.s32.totalorder %s17, 0
    %p185 = por %p183, %p184
    %p186 = scmp.ne.s32.totalorder %s172, %s173
    %p187 = scmp.eq.s32.totalorder %s18, 1
    %p188 = por %p186, %p187
    %p190 = scmp.ne.s32.totalorder %s173, %s189
    %p191 = scmp.eq.s32.totalorder %s18, 0
    %p192 = por %p190, %p191
    %p193 = scmp.le.s32.totalorder 1, %s12
    %p194 = scmp.lt.s32.totalorder %s12, 3
    %p195 = pnand %p193, %p194
    %p196 = pneg %p195
    // Predicated region
    $region9: #{subspace_block.3} parent=5 // pred_check
      _
    $region10: #{subspace_block.3} parent=5 // pred_check_branch
      %198 = sbr.rel (%p195) target = $region12
    $region11: #{subspace_block.3} parent=5 // pred_region
      %s199 = ssub.s32 %s12, 1
      // Predicated region
      $region13: #{subspace_block.3} parent=11 // pred_check
        %p200 = pneg %p73
      $region14: #{subspace_block.3} parent=11 // pred_check_branch
        %202 = sbr.rel (%p200) target = $region16
      $region15: #{subspace_block.3} parent=11 // pred_region
        _
      $region16: #{subspace_block.3} parent=11 // pred_fallthru
        _
      // Predicated region
      $region17: #{subspace_block.3} parent=11 // pred_check
        %p203 = pneg %p94
      $region18: #{subspace_block.3} parent=11 // pred_check_branch
        %205 = sbr.rel (%p203) target = $region20
      $region19: #{subspace_block.3} parent=11 // pred_region
        _
      $region20: #{subspace_block.3} parent=11 // pred_fallthru
        _
      // Predicated region
      $region21: #{subspace_block.3} parent=11 // pred_check
        %p206 = pneg %p115
      $region22: #{subspace_block.3} parent=11 // pred_check_branch
        %208 = sbr.rel (%p206) target = $region24
      $region23: #{subspace_block.3} parent=11 // pred_region
        _
      $region24: #{subspace_block.3} parent=11 // pred_fallthru
        _
      // Predicated region
      $region25: #{subspace_block.3} parent=11 // pred_check
        %p209 = pneg %p136
      $region26: #{subspace_block.3} parent=11 // pred_check_branch
        %211 = sbr.rel (%p209) target = $region28
      $region27: #{subspace_block.3} parent=11 // pred_region
        _
      $region28: #{subspace_block.3} parent=11 // pred_fallthru
        _
      // Predicated region
      $region29: #{subspace_block.3} parent=11 // pred_check
        %p212 = pneg %p157
      $region30: #{subspace_block.3} parent=11 // pred_check_branch
        %214 = sbr.rel (%p212) target = $region32
      $region31: #{subspace_block.3} parent=11 // pred_region
        _
      $region32: #{subspace_block.3} parent=11 // pred_fallthru
        _
    $region12: #{subspace_block.3} parent=5 // pred_fallthru
      _
    %p215 = scmp.lt.s32.totalorder %s12, 2
    // Predicated region
    $region33: #{subspace_block.3} parent=5 // pred_check
      %p216 = pneg %p215
    $region34: #{subspace_block.3} parent=5 // pred_check_branch
      %218 = sbr.rel (%p216) target = $region36
    $region35: #{subspace_block.3} parent=5 // pred_region
      // Predicated region
      $region37: #{subspace_block.3} parent=35 // pred_check
        %p219 = pneg %p46
      $region38: #{subspace_block.3} parent=35 // pred_check_branch
        %221 = sbr.rel (%p219) target = $region40
      $region39: #{subspace_block.3} parent=35 // pred_region
        %s222 = smul.u32 2, %s20
        %p223 = scmp.lt.s32.totalorder %s19, 1
        %s224 = scalar_select %p223, %s19, 1
        %p225 = scmp.lt.s32.totalorder %s222, 1
        %s226 = scalar_select %p225, %s222, 1
        %s227 = smul.addr %s224, 2
        %s228 = sadd.s32 %s226, %s227
        %s229 = smul.addr %s228, 4
        %s230 = scalar_lea.vmem %s0, %s229
        %s231 = smul.u32 2, %s20
      $region40: #{subspace_block.3} parent=35 // pred_fallthru
        _
    $region36: #{subspace_block.3} parent=5 // pred_fallthru
      _
    %p232 = scmp.le.s32.totalorder 1, %s12
    %p233 = scmp.lt.s32.totalorder %s12, 3
    %p234 = pnand %p232, %p233
    %p235 = pneg %p234
    // Predicated region
    $region41: #{subspace_block.3} parent=5 // pred_check
      _
    $region42: #{subspace_block.3} parent=5 // pred_check_branch
      %237 = sbr.rel (%p234) target = $region44
    $region43: #{subspace_block.3} parent=5 // pred_region
      %s238 = ssub.s32 %s12, 1
      %s239 = smul.u32 2, %s22
      %p240 = scmp.lt.s32.totalorder %s21, 1
      %s241 = scalar_select %p240, %s21, 1
      %p242 = scmp.lt.s32.totalorder %s239, 1
      %s243 = scalar_select %p242, %s239, 1
      %s244 = smul.addr %s241, 2
      %s245 = sadd.s32 %s243, %s244
      %s246 = smul.addr %s245, 4
      %s247 = scalar_lea.vmem %s0, %s246
      %p248 = pneg %p52
      %p249 = pneg %p49
      %p250 = pneg %p73
      %p251 = pneg %p70
      %p252 = pneg %p94
      %p253 = pneg %p91
      %p254 = pneg %p115
      %p255 = pneg %p112
      %p256 = pneg %p136
      %p257 = pneg %p133
      %p258 = pneg %p157
      %p259 = pneg %p154
      %p260 = pneg %p185
      %p261 = pneg %p182
      %s262 = smul.u32 2, %s22
      %p263 = scmp.lt.s32.totalorder %s21, 1
      %s264 = scalar_select %p263, %s21, 1
      %p265 = scmp.lt.s32.totalorder %s262, 1
      %s266 = scalar_select %p265, %s262, 1
      %s267 = smul.addr %s264, 2
      %s268 = sadd.s32 %s266, %s267
      %s269 = smul.addr %s268, 8
      %s270 = scalar_lea.vmem %s6, %s269
      %s271 = smul.u32 2, %s22
      %p272 = scmp.lt.s32.totalorder %s21, 1
      %s273 = scalar_select %p272, %s21, 1
      %p274 = scmp.lt.s32.totalorder %s271, 1
      %s275 = scalar_select %p274, %s271, 1
      %s276 = smul.addr %s273, 2
      %s277 = sadd.s32 %s275, %s276
      %s278 = smul.addr %s277, 4
      %s279 = scalar_lea.vmem %s0, %s278
      %s280 = smul.u32 2, %s22
      %s281 = smul.u32 2, %s22
      %p282 = scmp.lt.s32.totalorder %s21, 1
      %s283 = scalar_select %p282, %s21, 1
      %p284 = scmp.lt.s32.totalorder %s281, 1
      %s285 = scalar_select %p284, %s281, 1
      %s286 = smul.addr %s283, 2
      %s287 = sadd.s32 %s285, %s286
      %s288 = smul.addr %s287, 8
      %s289 = scalar_lea.vmem %s6, %s288
      %s290 = smul.u32 2, %s22
      %v292 = vld [vmem:[%s279] sm:$0xff]
      %v294 = vcombine.high %v292, %v292
      %v296 = vpack.c.bf16 %v292, %v292
      %v297 = vpack.c.bf16 %v294, %v294
      %v298 = vld [vmem:[%s1] sm:$0xf]
      %vm299 = vcmask 31744
      %v301 = vsel %vm299, %v298, 0
      %vm303 = vcmask 1041408
      %v305 = vsel %vm303, %v296, 0
      %v308 = vsel %vm303, %v297, 0
      %310 = vmatprep.subr.bf16.mxu0 0
      %311 = vmatpush1.bf16.msra.mxu0 0
      %312 = vmatprep.subr.bf16.mxu0 0
      %313 = vmatpush1.bf16.msra.mxu0 0
      %314 = vmatprep.subr.bf16.mxu0 0
      %315 = vmatpush1.bf16.msra.mxu0 0
      %316 = vmatprep.subr.bf16.mxu0 0
      %317 = vmatpush1.bf16.msra.mxu0 0
      %318 = vmatprep.subr.bf16.mxu0 0
      %319 = vmatpush1.bf16.msra.mxu0 0
      %320 = vmatprep.subr.bf16.mxu0 0
      %321 = vmatpush1.bf16.msra.mxu0 0
      %322 = vmatprep.subr.bf16.mxu0 0
      %323 = vmatpush1.bf16.msra.mxu0 0
      %324 = vmatprep.subr.bf16.mxu0 %v308
      %325 = vmatpush1.bf16.msra.mxu0 %v305
      %326 = vmatprep.subr.bf16.mxu0 0
      %327 = vmatpush2.bf16.msra.mxu0 0
      %328 = vmatprep.subr.bf16.mxu0 0
      %329 = vmatpush2.bf16.msra.mxu0 0
      %330 = vmatprep.subr.bf16.mxu0 0
      %331 = vmatpush2.bf16.msra.mxu0 0
      %332 = vmatprep.subr.bf16.mxu0 0
      %333 = vmatpush2.bf16.msra.mxu0 0
      %334 = vmatprep.subr.bf16.mxu0 0
      %335 = vmatpush2.bf16.msra.mxu0 0
      %336 = vmatprep.subr.bf16.mxu0 0
      %337 = vmatpush2.bf16.msra.mxu0 0
      %338 = vmatprep.subr.bf16.mxu0 0
      %339 = vmatpush2.bf16.msra.mxu0 0
      %340 = vmatprep.subr.bf16.mxu0 0
      %341 = vmatpush2.bf16.msra.mxu0 0
      %342 = vmatprep.mubr.bf16.mxu0 0
      %343 = vmatmul.mubr.bf16.gmra.mxu0 %v301
      %v344 = vpop.f32.mrf.mxu0
      %v345 = vadd.f32 0.0, %v344
      %v346 = vpop.f32.mrf.mxu0
      %v347 = vadd.f32 0.0, %v346
      %v348 = vpop.f32.mrf.mxu0
      %v349 = vpop.f32.mrf.mxu0
      %350 = vdwg.mxu0
      %v351 = vld [vmem:[%s4] sm:$0xff]
      %353 = vset.pattern.permute.xlu0 0
      %354 = vperm.xlu0 %353, %v351
      %v355 = vpop.permute.xlu0 %354
      %v357 = vmul.f32 %v345, %v355
      %v358 = vmul.f32 %v347, %v355
      %v359 = vld [vmem:[%s5] sm:$0xff]
      %361 = vset.pattern.permute.xlu0 0
      %362 = vperm.xlu0 %361, %v359
      %v363 = vpop.permute.xlu0 %362
      %v365 = vadd.f32 %v357, %v363
      %v366 = vadd.f32 %v358, %v363
      %vm367 = vcmp.ge.f32.partialorder %v365, 0.0
      %vm368 = vcmp.ge.f32.partialorder %v366, 0.0
      %v369 = vmul.f32 %v365, 0.01
      %v370 = vmul.f32 %v366, 0.01
      %v371 = vsel %vm367, %v365, %v369
      %v372 = vsel %vm368, %v366, %v370
      %v373 = vld [vmem:[%s2] sm:$0xf]
      %v374 = vpack.c.bf16 %v371, %v371
      %v375 = vpack.c.bf16 %v372, %v372
      %vm376 = vcmask 64512
      %v378 = vsel %vm376, %v373, 0
      %vm380 = vcmask 1043456
      %v382 = vsel %vm380, %v374, 0
      %v385 = vsel %vm380, %v375, 0
      %387 = vmatprep.subr.bf16.mxu0 0
      %388 = vmatpush1.bf16.msra.mxu0 0
      %389 = vmatprep.subr.bf16.mxu0 0
      %390 = vmatpush1.bf16.msra.mxu0 0
      %391 = vmatprep.subr.bf16.mxu0 0
      %392 = vmatpush1.bf16.msra.mxu0 0
      %393 = vmatprep.subr.bf16.mxu0 0
      %394 = vmatpush1.bf16.msra.mxu0 0
      %395 = vmatprep.subr.bf16.mxu0 0
      %396 = vmatpush1.bf16.msra.mxu0 0
      %397 = vmatprep.subr.bf16.mxu0 0
      %398 = vmatpush1.bf16.msra.mxu0 0
      %399 = vmatprep.subr.bf16.mxu0 0
      %400 = vmatpush1.bf16.msra.mxu0 0
      %401 = vmatprep.subr.bf16.mxu0 %v385
      %402 = vmatpush1.bf16.msra.mxu0 %v382
      %403 = vmatprep.subr.bf16.mxu0 0
      %404 = vmatpush2.bf16.msra.mxu0 0
      %405 = vmatprep.subr.bf16.mxu0 0
      %406 = vmatpush2.bf16.msra.mxu0 0
      %407 = vmatprep.subr.bf16.mxu0 0
      %408 = vmatpush2.bf16.msra.mxu0 0
      %409 = vmatprep.subr.bf16.mxu0 0
      %410 = vmatpush2.bf16.msra.mxu0 0
      %411 = vmatprep.subr.bf16.mxu0 0
      %412 = vmatpush2.bf16.msra.mxu0 0
      %413 = vmatprep.subr.bf16.mxu0 0
      %414 = vmatpush2.bf16.msra.mxu0 0
      %415 = vmatprep.subr.bf16.mxu0 0
      %416 = vmatpush2.bf16.msra.mxu0 0
      %417 = vmatprep.subr.bf16.mxu0 0
      %418 = vmatpush2.bf16.msra.mxu0 0
      %419 = vmatprep.mubr.bf16.mxu0 0
      %420 = vmatmul.mubr.bf16.gmra.mxu0 %v378
      %v421 = vpop.f32.mrf.mxu0
      %v422 = vadd.f32 0.0, %v421
      %v423 = vpop.f32.mrf.mxu0
      %v424 = vadd.f32 0.0, %v423
      %v425 = vpop.f32.mrf.mxu0
      %v426 = vpop.f32.mrf.mxu0
      %427 = vdwg.mxu0
      %s428 = scalar_lea.vmem %s4, 8
      %v429 = vld [vmem:[%s428] sm:$0xff]
      %431 = vset.pattern.permute.xlu0 0
      %432 = vperm.xlu0 %431, %v429
      %v433 = vpop.permute.xlu0 %432
      %v435 = vmul.f32 %v422, %v433
      %v436 = vmul.f32 %v424, %v433
      %s437 = scalar_lea.vmem %s5, 8
      %v438 = vld [vmem:[%s437] sm:$0xff]
      %440 = vset.pattern.permute.xlu0 0
      %441 = vperm.xlu0 %440, %v438
      %v442 = vpop.permute.xlu0 %441
      %v444 = vadd.f32 %v435, %v442
      %v445 = vadd.f32 %v436, %v442
      %vm446 = vcmp.ge.f32.partialorder %v444, 0.0
      %vm447 = vcmp.ge.f32.partialorder %v445, 0.0
      %v448 = vmul.f32 %v444, 0.01
      %v449 = vmul.f32 %v445, 0.01
      %v450 = vsel %vm446, %v444, %v448
      %v451 = vsel %vm447, %v445, %v449
      %v452 = vld [vmem:[%s3] sm:$0xf]
      %v453 = vpack.c.bf16 %v450, %v450
      %v454 = vpack.c.bf16 %v451, %v451
      %v456 = vsel %vm376, %v452, 0
      %v459 = vsel %vm380, %v453, 0
      %v462 = vsel %vm380, %v454, 0
      %464 = vmatprep.subr.bf16.mxu0 0
      %465 = vmatpush1.bf16.msra.mxu0 0
      %466 = vmatprep.subr.bf16.mxu0 0
      %467 = vmatpush1.bf16.msra.mxu0 0
      %468 = vmatprep.subr.bf16.mxu0 0
      %469 = vmatpush1.bf16.msra.mxu0 0
      %470 = vmatprep.subr.bf16.mxu0 0
      %471 = vmatpush1.bf16.msra.mxu0 0
      %472 = vmatprep.subr.bf16.mxu0 0
      %473 = vmatpush1.bf16.msra.mxu0 0
      %474 = vmatprep.subr.bf16.mxu0 0
      %475 = vmatpush1.bf16.msra.mxu0 0
      %476 = vmatprep.subr.bf16.mxu0 0
      %477 = vmatpush1.bf16.msra.mxu0 0
      %478 = vmatprep.subr.bf16.mxu0 %v462
      %479 = vmatpush1.bf16.msra.mxu0 %v459
      %480 = vmatprep.subr.bf16.mxu0 0
      %481 = vmatpush2.bf16.msra.mxu0 0
      %482 = vmatprep.subr.bf16.mxu0 0
      %483 = vmatpush2.bf16.msra.mxu0 0
      %484 = vmatprep.subr.bf16.mxu0 0
      %485 = vmatpush2.bf16.msra.mxu0 0
      %486 = vmatprep.subr.bf16.mxu0 0
      %487 = vmatpush2.bf16.msra.mxu0 0
      %488 = vmatprep.subr.bf16.mxu0 0
      %489 = vmatpush2.bf16.msra.mxu0 0
      %490 = vmatprep.subr.bf16.mxu0 0
      %491 = vmatpush2.bf16.msra.mxu0 0
      %492 = vmatprep.subr.bf16.mxu0 0
      %493 = vmatpush2.bf16.msra.mxu0 0
      %494 = vmatprep.subr.bf16.mxu0 0
      %495 = vmatpush2.bf16.msra.mxu0 0
      %496 = vmatprep.mubr.bf16.mxu0 0
      %497 = vmatmul.mubr.bf16.gmra.mxu0 %v456
      %v498 = vpop.f32.mrf.mxu0
      %v499 = vadd.f32 0.0, %v498
      %v500 = vpop.f32.mrf.mxu0
      %v501 = vadd.f32 0.0, %v500
      %v502 = vpop.f32.mrf.mxu0
      %v503 = vpop.f32.mrf.mxu0
      %504 = vdwg.mxu0
      %s505 = scalar_lea.vmem %s4, 16
      %v506 = vld [vmem:[%s505] sm:$0xff]
      %508 = vset.pattern.permute.xlu0 0
      %509 = vperm.xlu0 %508, %v506
      %v510 = vpop.permute.xlu0 %509
      %v512 = vmul.f32 %v499, %v510
      %v513 = vmul.f32 %v501, %v510
      %s514 = scalar_lea.vmem %s5, 16
      %v515 = vld [vmem:[%s514] sm:$0xff]
      %517 = vset.pattern.permute.xlu0 0
      %518 = vperm.xlu0 %517, %v515
      %v519 = vpop.permute.xlu0 %518
      %v521 = vadd.f32 %v512, %v519
      %v522 = vadd.f32 %v513, %v519
      %v523 = vadd.f32 %v521, %v371
      %v524 = vadd.f32 %v522, %v372
      %525 = vst [vmem:[%s289] sm:$0xff] %v523
      %526 = vst [vmem:[%s289 + $0x8] sm:$0xff] %v524
      %s527 = smul.u32 2, %s22
      %p528 = scmp.lt.s32.totalorder %s21, 1
      %s529 = scalar_select %p528, %s21, 1
      %p530 = scmp.lt.s32.totalorder %s527, 1
      %s531 = scalar_select %p530, %s527, 1
      %s532 = smul.addr %s529, 2
      %s533 = sadd.s32 %s531, %s532
      %s534 = smul.addr %s533, 8
      %s535 = scalar_lea.vmem %s6, %s534
      // Predicated region
      $region45: #{subspace_block.3} parent=43 // pred_check
        %p536 = pneg %p182
      $region46: #{subspace_block.3} parent=43 // pred_check_branch
        %538 = sbr.rel (%p536) target = $region48
      $region47: #{subspace_block.3} parent=43 // pred_region
        %s539 = smul.u32 2, %s22
      $region48: #{subspace_block.3} parent=43 // pred_fallthru
        _
    $region44: #{subspace_block.3} parent=5 // pred_fallthru
      _
    %p540 = scmp.le.s32.totalorder 2, %s12
    // Predicated region
    $region49: #{subspace_block.3} parent=5 // pred_check
      %p541 = pneg %p540
    $region50: #{subspace_block.3} parent=5 // pred_check_branch
      %543 = sbr.rel (%p541) target = $region52
    $region51: #{subspace_block.3} parent=5 // pred_region
      %s544 = ssub.s32 %s12, 2
      // Predicated region
      $region53: #{subspace_block.3} parent=51 // pred_check
        %p545 = pneg %p188
      $region54: #{subspace_block.3} parent=51 // pred_check_branch
        %547 = sbr.rel (%p545) target = $region56
      $region55: #{subspace_block.3} parent=51 // pred_region
        %s548 = smul.u32 2, %s24
        %p549 = scmp.lt.s32.totalorder %s23, 1
        %s550 = scalar_select %p549, %s23, 1
        %p551 = scmp.lt.s32.totalorder %s548, 1
        %s552 = scalar_select %p551, %s548, 1
        %s553 = smul.addr %s550, 2
        %s554 = sadd.s32 %s552, %s553
        %s555 = smul.addr %s554, 8
        %s556 = scalar_lea.vmem %s6, %s555
      $region56: #{subspace_block.3} parent=51 // pred_fallthru
        _
    $region52: #{subspace_block.3} parent=5 // pred_fallthru
      _
  $region6: #{subspace_block.3} parent=0 // loop_footer
    %s16 = sadd.s32 1, %s12
  $region7: #{subspace_block.3} parent=0 // loop_footer_branch
    %11 = sbr.rel target = $region3
  $region8: #{subspace_block.3} parent=0 // loop_exit
    _

</llo_original>
